<compile_context>
chip_gen: v6e
topology: v6e:2x2x1
jax: 0.10.0
libtpu: 0.0.40
codegen_flags: <defaults>
</compile_context>

<pallas_src>
import jax
import jax.numpy as jnp
from jax import lax
from jax.experimental import pallas as pl
from jax.experimental.pallas import tpu as pltpu


def _round_up(x, m):
    return ((x + m - 1) // m) * m


def _mlp_kernel(x_ref, w1t_ref, b1_ref, w2t_ref, b2_ref, w3r_ref, b3_ref, o_ref):
    """Fused MLP, feature-major internally (batch mapped to lanes).

    x_ref  : (TB, D)   f32   input tile, straight from HBM (batch-major)
    w1t_ref: (H1, D)   f32   fc1 weight (out, in)
    b1_ref : (H1, 1)   f32
    w2t_ref: (H2, H1)  f32   fc2 weight (out, in)   (H2 = 64, NOT padded)
    b2_ref : (H2, 1)   f32
    w3r_ref: (1, H2)   f32   fc3 weight row
    b3_ref : (1, 1)    f32   (SMEM scalar)
    o_ref  : (1, TB)   f32   lane-dense output row
    """
    x = x_ref[...]                                                    # (TB, D) f32

    # fc1 + ReLU: contract D of both operands -> feature-major (H1, TB).
    # (einsum-'hd,bd->hb' pattern; no explicit transpose of the big x tile.)
    h1 = lax.dot_general(w1t_ref[...], x,
                         dimension_numbers=(((1,), (1,)), ((), ())),
                         preferred_element_type=jnp.float32)          # (H1, TB)
    h1 = jnp.maximum(h1 + b1_ref[...], 0.0)

    # fc2 + ReLU (H2 = 64, unpadded).
    h2 = jnp.dot(w2t_ref[...], h1,
                 preferred_element_type=jnp.float32)                  # (H2, TB)
    h2 = jnp.maximum(h2 + b2_ref[...], 0.0)

    # fc3 on the MXU: (1, H2) @ (H2, TB) -> lane-dense (1, TB) output row.
    out = jnp.dot(w3r_ref[...], h2, preferred_element_type=jnp.float32)
    o_ref[...] = out + b3_ref[0, 0]


def interatomic_potential_nn(x, params, *, block_b=1024):
    """Forward pass of InteratomiPotentialNN.

    x:      (B, input_dim) float32
    params: dict of weights stored as (in, out) and biases as (1, out)
            (transpose of PyTorch's nn.Linear layout, numerically identical).
    Returns (B, 1) float32.
    """
    assert block_b % 128 == 0, "block_b must be a multiple of 128 (lane width)"
    w1, b1, w2, b2, w3, b3 = (params["w1"], params["b1"], params["w2"],
                              params["b2"], params["w3"], params["b3"])
    B, D = x.shape
    H1 = w1.shape[1]
    H2 = w2.shape[1]
    f32 = jnp.float32

    # Tiny weight-side prep (a few tens of KiB; negligible).  (out, in) layout.
    w1t = w1.T.astype(f32)                     # (H1, D)
    b1c = b1.reshape(H1, 1).astype(f32)
    w2t = w2.T.astype(f32)                     # (H2, H1)
    b2c = b2.reshape(H2, 1).astype(f32)
    w3r = w3.T.reshape(1, H2).astype(f32)      # (1, H2)
    b3c = b3.reshape(1, 1).astype(f32)

    # Batch tiling: multiple of 128 lanes; only pad the batch (cheaply) if it is not
    # already a multiple of the block size.  No feature-dim padding, no transpose.
    block_b = max(128, min(block_b, _round_up(B, 128)))
    B_pad = _round_up(B, block_b)
    x_in = x if B_pad == B else jnp.pad(x, ((0, B_pad - B), (0, 0)))

    grid = (B_pad // block_b,)

    out_row = pl.pallas_call(
        _mlp_kernel,
        out_shape=jax.ShapeDtypeStruct((1, B_pad), f32),
        grid=grid,
        in_specs=[
            pl.BlockSpec((block_b, D), lambda i: (i, 0)),     # x tile, direct from HBM
            pl.BlockSpec((H1, D), lambda i: (0, 0)),          # w1 (out,in), VMEM-resident
            pl.BlockSpec((H1, 1), lambda i: (0, 0)),          # b1
            pl.BlockSpec((H2, H1), lambda i: (0, 0)),         # w2 (out,in)
            pl.BlockSpec((H2, 1), lambda i: (0, 0)),          # b2
            pl.BlockSpec((1, H2), lambda i: (0, 0)),          # w3 row
            pl.BlockSpec(memory_space=pltpu.MemorySpace.SMEM),  # b3 scalar via SMEM
        ],
        out_specs=pl.BlockSpec((1, block_b), lambda i: (0, i)),  # lane-dense output row
        compiler_params=pltpu.CompilerParams(
            dimension_semantics=("parallel",)),               # shards steps across TCs
    )(x_in, w1t, b1c, w2t, b2c, w3r, b3c)

    # Back to the module's (B, 1) layout; drop any batch padding.
    return out_row[0, :B].reshape(B, 1)


def init_params(key, input_dim):
    """Deterministic synthetic params matching nn.Linear init (stored transposed)."""
    k1, k2, k3, k4, k5, k6 = jax.random.split(key, 6)

    def lin(kw, kb, fan_in, fan_out):
        bound = 1.0 / jnp.sqrt(fan_in)
        w = jax.random.uniform(kw, (fan_in, fan_out), jnp.float32, -bound, bound)
        b = jax.random.uniform(kb, (1, fan_out), jnp.float32, -bound, bound)
        return w, b

    w1, b1 = lin(k1, k2, input_dim, 128)
    w2, b2 = lin(k3, k4, 128, 64)
    w3, b3 = lin(k5, k6, 64, 1)
    return {"w1": w1, "b1": b1, "w2": w2, "b2": b2, "w3": w3, "b3": b3}


if __name__ == "__main__":
    key = jax.random.PRNGKey(0)
    kx, kp = jax.random.split(key)

    input_dim = 32
    batch = 2048  # 2 grid steps of block_b=1024 -> both TensorCores busy on v7x
    x = jax.random.normal(kx, (batch, input_dim), dtype=jnp.float32)
    params = init_params(kp, input_dim)

    out = jax.block_until_ready(interatomic_potential_nn(x, params))

    # Full-precision f32 reference (module semantics).
    def ref_f32(x, p):
        hp = jax.lax.Precision.HIGHEST
        h = jnp.maximum(jnp.dot(x, p["w1"], precision=hp) + p["b1"], 0.0)
        h = jnp.maximum(jnp.dot(h, p["w2"], precision=hp) + p["b2"], 0.0)
        return jnp.dot(h, p["w3"], precision=hp) + p["b3"]

    expected = ref_f32(x, params)
    assert out.shape == (batch, 1), out.shape
    assert jnp.allclose(out, expected, atol=5e-3, rtol=5e-3), "mismatch vs f32 reference"
    print("KERNEL_OK")
</pallas_src>

<mosaic_0001>
module attributes {stable_mosaic.version = 11 : i64} {
  func.func @_mlp_kernel(%arg0: i32, %arg1: memref<1024x32xf32, #tpu.memory_space<vmem>>, %arg2: memref<128x32xf32, #tpu.memory_space<vmem>>, %arg3: memref<128x1xf32, #tpu.memory_space<vmem>>, %arg4: memref<64x128xf32, #tpu.memory_space<vmem>>, %arg5: memref<64x1xf32, #tpu.memory_space<vmem>>, %arg6: memref<1x64xf32, #tpu.memory_space<vmem>>, %arg7: memref<1x1xf32, #tpu.memory_space<smem>>, %arg8: memref<1x1024xf32, #tpu.memory_space<vmem>>) attributes {dimension_semantics = [#tpu.dimension_semantics<parallel>], iteration_bounds = array<i64: 2>, scalar_prefetch = 0 : i64, scratch_operands = 0 : i64, tpu.core_type = #tpu.core_type<tc>, window_params = [{transform_indices = @transform_0, window_bounds = array<i64: 1024, 32>}, {pipeline_mode = #tpu.pipeline_mode<synchronous>, transform_indices = @transform_1, window_bounds = array<i64: 128, 32>}, {pipeline_mode = #tpu.pipeline_mode<synchronous>, transform_indices = @transform_2, window_bounds = array<i64: 128, 1>}, {pipeline_mode = #tpu.pipeline_mode<synchronous>, transform_indices = @transform_3, window_bounds = array<i64: 64, 128>}, {pipeline_mode = #tpu.pipeline_mode<synchronous>, transform_indices = @transform_4, window_bounds = array<i64: 64, 1>}, {pipeline_mode = #tpu.pipeline_mode<synchronous>, transform_indices = @transform_5, window_bounds = array<i64: 1, 64>}, {transform_indices = @transform_6, window_bounds = array<i64: 1, 1>}, {transform_indices = @transform_7, window_bounds = array<i64: 1, 1024>}]} {
    %c0 = arith.constant 0 : index
    %c0_0 = arith.constant 0 : index
    %0 = vector.load %arg1[%c0, %c0_0] : memref<1024x32xf32, #tpu.memory_space<vmem>>, vector<1024x32xf32>
    %c0_1 = arith.constant 0 : index
    %c0_2 = arith.constant 0 : index
    %1 = vector.load %arg2[%c0_1, %c0_2] : memref<128x32xf32, #tpu.memory_space<vmem>>, vector<128x32xf32>
    %cst = arith.constant dense<0.000000e+00> : vector<128x1024xf32>
    %2 = tpu.matmul %1, %0, %cst {dimension_numbers = #tpu.dot_dimension_numbers<[1], [1], [0], [0], [0, 0, 1, 0], [], []>} : vector<128x32xf32>, vector<1024x32xf32>, vector<128x1024xf32> -> vector<128x1024xf32>
    %c0_3 = arith.constant 0 : index
    %c0_4 = arith.constant 0 : index
    %3 = vector.load %arg3[%c0_3, %c0_4] : memref<128x1xf32, #tpu.memory_space<vmem>>, vector<128x1xf32>
    %4 = vector.broadcast %3 : vector<128x1xf32> to vector<128x1024xf32>
    %5 = arith.addf %2, %4 : vector<128x1024xf32>
    %cst_5 = arith.constant 0.000000e+00 : f32
    %6 = vector.broadcast %cst_5 : f32 to vector<128x1024xf32>
    %7 = arith.maximumf %5, %6 : vector<128x1024xf32>
    %c0_6 = arith.constant 0 : index
    %c0_7 = arith.constant 0 : index
    %8 = vector.load %arg4[%c0_6, %c0_7] : memref<64x128xf32, #tpu.memory_space<vmem>>, vector<64x128xf32>
    %cst_8 = arith.constant dense<0.000000e+00> : vector<64x1024xf32>
    %9 = tpu.matmul %8, %7, %cst_8 {dimension_numbers = #tpu.dot_dimension_numbers<[1], [0], [0], [1], [0, 0, 1, 1], [], []>} : vector<64x128xf32>, vector<128x1024xf32>, vector<64x1024xf32> -> vector<64x1024xf32>
    %c0_9 = arith.constant 0 : index
    %c0_10 = arith.constant 0 : index
    %10 = vector.load %arg5[%c0_9, %c0_10] : memref<64x1xf32, #tpu.memory_space<vmem>>, vector<64x1xf32>
    %11 = vector.broadcast %10 : vector<64x1xf32> to vector<64x1024xf32>
    %12 = arith.addf %9, %11 : vector<64x1024xf32>
    %cst_11 = arith.constant 0.000000e+00 : f32
    %13 = vector.broadcast %cst_11 : f32 to vector<64x1024xf32>
    %14 = arith.maximumf %12, %13 : vector<64x1024xf32>
    %c0_12 = arith.constant 0 : index
    %c0_13 = arith.constant 0 : index
    %15 = vector.load %arg6[%c0_12, %c0_13] : memref<1x64xf32, #tpu.memory_space<vmem>>, vector<1x64xf32>
    %cst_14 = arith.constant dense<0.000000e+00> : vector<1x1024xf32>
    %16 = tpu.matmul %15, %14, %cst_14 {dimension_numbers = #tpu.dot_dimension_numbers<[1], [0], [0], [1], [0, 0, 1, 1], [], []>} : vector<1x64xf32>, vector<64x1024xf32>, vector<1x1024xf32> -> vector<1x1024xf32>
    %c0_15 = arith.constant 0 : index
    %c0_16 = arith.constant 0 : index
    %17 = memref.load %arg7[%c0_15, %c0_16] : memref<1x1xf32, #tpu.memory_space<smem>>
    %18 = vector.broadcast %17 : f32 to vector<1x1024xf32>
    %19 = arith.addf %16, %18 : vector<1x1024xf32>
    %c0_17 = arith.constant 0 : index
    %c0_18 = arith.constant 0 : index
    %20 = vector.load %arg8[%c0_17, %c0_18] : memref<1x1024xf32, #tpu.memory_space<vmem>>, vector<1x1024xf32>
    tpu.vector_store %arg8[%c0_17, %c0_18], %19 {strides = array<i32>} : memref<1x1024xf32, #tpu.memory_space<vmem>>, vector<1x1024xf32>,
    return
  }
  func.func @transform_0(%arg0: i32) -> (i32, i32) {
    %c0_i32 = arith.constant 0 : i32
    %c0_i32_0 = arith.constant 0 : i32
    return %arg0, %c0_i32 : i32, i32
  }
  func.func @transform_1(%arg0: i32) -> (i32, i32) {
    %c0_i32 = arith.constant 0 : i32
    %c0_i32_0 = arith.constant 0 : i32
    %c0_i32_1 = arith.constant 0 : i32
    return %c0_i32, %c0_i32_0 : i32, i32
  }
  func.func @transform_2(%arg0: i32) -> (i32, i32) {
    %c0_i32 = arith.constant 0 : i32
    %c0_i32_0 = arith.constant 0 : i32
    %c0_i32_1 = arith.constant 0 : i32
    return %c0_i32, %c0_i32_0 : i32, i32
  }
  func.func @transform_3(%arg0: i32) -> (i32, i32) {
    %c0_i32 = arith.constant 0 : i32
    %c0_i32_0 = arith.constant 0 : i32
    %c0_i32_1 = arith.constant 0 : i32
    return %c0_i32, %c0_i32_0 : i32, i32
  }
  func.func @transform_4(%arg0: i32) -> (i32, i32) {
    %c0_i32 = arith.constant 0 : i32
    %c0_i32_0 = arith.constant 0 : i32
    %c0_i32_1 = arith.constant 0 : i32
    return %c0_i32, %c0_i32_0 : i32, i32
  }
  func.func @transform_5(%arg0: i32) -> (i32, i32) {
    %c0_i32 = arith.constant 0 : i32
    %c0_i32_0 = arith.constant 0 : i32
    %c0_i32_1 = arith.constant 0 : i32
    return %c0_i32, %c0_i32_0 : i32, i32
  }
  func.func @transform_6(%arg0: i32) -> (i32, i32) {
    %c0_i32 = arith.constant 0 : i32
    %c0_i32_0 = arith.constant 0 : i32
    %c0_i32_1 = arith.constant 0 : i32
    return %c0_i32, %c0_i32_0 : i32, i32
  }
  func.func @transform_7(%arg0: i32) -> (i32, i32) {
    %c0_i32 = arith.constant 0 : i32
    %c0_i32_0 = arith.constant 0 : i32
    return %c0_i32, %arg0 : i32, i32
  }
}

</mosaic_0001>

<llo_original>
// kernel: tpu_custom_call.1
$region0: #{tpu_custom_call.1}
  #allocation0 [shape = 'u32[]', space=smem, size = 0x4, offset = 0x4, fixed_abs, tag = 'smem constant byte address 0x4 - core index']
  #allocation1 [shape = 'u32[144,128]{1,0:T(1,128)}', space=vmem, size = 0x12000, scoped, tag = 'internal scratch']
  #allocation2 [shape = 'f32[1,1]{1,0:T(1,128)S(6)}', space=smem, size = 0x200, scoped, tag = 'scoped memory for tpu_custom_call.1']
  %s0 = inlined_call_operand.vmem [shape: f32[2048,32], index: 0, kind: input, shape index: {}]
  %s1 = inlined_call_operand.vmem [shape: f32[128,32], index: 1, kind: input, shape index: {}]
  %s2 = inlined_call_operand.vmem [shape: f32[128,1], index: 2, kind: input, shape index: {}]
  %s3 = inlined_call_operand.vmem [shape: f32[64,128], index: 3, kind: input, shape index: {}]
  %s4 = inlined_call_operand.vmem [shape: f32[64,1], index: 4, kind: input, shape index: {}]
  %s5 = inlined_call_operand.vmem [shape: f32[1,64], index: 5, kind: input, shape index: {}]
  %s6 = inlined_call_operand.<no memory space> [shape: f32[1,1], index: 6, kind: input, shape index: {}]
  %s7 = inlined_call_operand.hbm [shape: f32[1,2048], index: 7, kind: output, shape index: {}]
  %s8 = sld [smem:[#allocation0]]
  $region61: #{tpu_custom_call.1} parent=0
    _
  %s10 = ssub.s32 1, %s8
  %s11 = scalar_select 0, %s10, %s8
  %12 = sst [smem:[#allocation2]] %s6
  $region1: #{tpu_custom_call.1} parent=0
    #allocation3 [shape = 'u8[8192]{0}', space=vmem, size = 0x2000, scoped, tag = 'output window, operand 0']
    #allocation4 [shape = 's32[2]{0}', space=sflag, size = 0x8, scoped, tag = 'scoped memory for tpu_custom_call.1']
    %13 = vsyncpa [#allocation4], 0
    %s14 = scalar_lea.sflag [#allocation4], 1
    %15 = vsyncpa %s14, 0
    loop: start=0, step=1, limit=4
    $region2: #{tpu_custom_call.1} parent=1 // loop_pre_header
      _
    $region3: #{tpu_custom_call.1} parent=1 // loop_header
      %s17 = sphi 0, %s21
      %p18 = scmp.ge.s32.totalorder %s17, 4
      %s27 = sphi 0, %s29
      %s30 = sphi 0, %s27
      %s31 = sphi 0, %s30
      %s47 = sphi 0, %s31
      %s51 = sphi 0, %s51
      %s53 = sphi 0, %s51
      %s54 = sphi 0, %s53
      %s68 = sphi 0, %s54
      %s72 = sphi 0, %s72
      %s74 = sphi 0, %s72
      %s75 = sphi 0, %s74
      %s89 = sphi 0, %s75
      %s93 = sphi 0, %s93
      %s95 = sphi 0, %s93
      %s96 = sphi 0, %s95
      %s110 = sphi 0, %s96
      %s114 = sphi 0, %s114
      %s116 = sphi 0, %s114
      %s117 = sphi 0, %s116
      %s131 = sphi 0, %s117
      %s135 = sphi 0, %s135
      %s137 = sphi 0, %s135
      %s138 = sphi 0, %s137
      %s152 = sphi 0, %s138
      %s156 = sphi 0, %s156
      %s158 = sphi 0, %s156
      %s159 = sphi 0, %s158
      %s173 = sphi 0, %s159
      %s179 = sphi 0, %s181
      %s182 = sphi 0, %s179
      %s183 = sphi 0, %s182
      %s199 = sphi 0, %s183
    $region4: #{tpu_custom_call.1} parent=1 // loop_header_branch
      %20 = sbr.rel (%p18) target = $region8
    $region5: #{tpu_custom_call.1} parent=1 // loop_body
      %s22 = ssub.s32 %s17, 1
      %s23 = ssub.s32 %s17, 2
      %s24 = sadd.s32 %s17, 1
      %s25 = ssub.s32 %s17, %s24
      %p26 = scmp.eq.s32.totalorder %s25, 0
      %s28 = sadd.s32 %s27, 1
      %s29 = scalar_select %p26, %s27, %s28
      %p32 = pneg %p26
      %p33 = scmp.eq.s32.totalorder %s17, 1
      %p34 = por %p32, %p33
      %p35 = scmp.ne.s32.totalorder %s27, %s30
      %p36 = scmp.eq.s32.totalorder %s17, 0
      %p37 = por %p35, %p36
      %p38 = scmp.ne.s32.totalorder %s27, %s30
      %p39 = scmp.eq.s32.totalorder %s22, 1
      %p40 = por %p38, %p39
      %p41 = scmp.ne.s32.totalorder %s30, %s31
      %p42 = scmp.eq.s32.totalorder %s22, 0
      %p43 = por %p41, %p42
      %p44 = scmp.ne.s32.totalorder %s30, %s31
      %p45 = scmp.eq.s32.totalorder %s23, 1
      %p46 = por %p44, %p45
      %p48 = scmp.ne.s32.totalorder %s31, %s47
      %p49 = scmp.eq.s32.totalorder %s23, 0
      %p50 = por %p48, %p49
      %s52 = sadd.s32 %s51, 1
      %p55 = scmp.eq.s32.totalorder %s17, 1
      %p56 = scmp.ne.s32.totalorder %s51, %s53
      %p57 = scmp.eq.s32.totalorder %s17, 0
      %p58 = por %p56, %p57
      %p59 = scmp.ne.s32.totalorder %s51, %s53
      %p60 = scmp.eq.s32.totalorder %s22, 1
      %p61 = por %p59, %p60
      %p62 = scmp.ne.s32.totalorder %s53, %s54
      %p63 = scmp.eq.s32.totalorder %s22, 0
      %p64 = por %p62, %p63
      %p65 = scmp.ne.s32.totalorder %s53, %s54
      %p66 = scmp.eq.s32.totalorder %s23, 1
      %p67 = por %p65, %p66
      %p69 = scmp.ne.s32.totalorder %s54, %s68
      %p70 = scmp.eq.s32.totalorder %s23, 0
      %p71 = por %p69, %p70
      %s73 = sadd.s32 %s72, 1
      %p76 = scmp.eq.s32.totalorder %s17, 1
      %p77 = scmp.ne.s32.totalorder %s72, %s74
      %p78 = scmp.eq.s32.totalorder %s17, 0
      %p79 = por %p77, %p78
      %p80 = scmp.ne.s32.totalorder %s72, %s74
      %p81 = scmp.eq.s32.totalorder %s22, 1
      %p82 = por %p80, %p81
      %p83 = scmp.ne.s32.totalorder %s74, %s75
      %p84 = scmp.eq.s32.totalorder %s22, 0
      %p85 = por %p83, %p84
      %p86 = scmp.ne.s32.totalorder %s74, %s75
      %p87 = scmp.eq.s32.totalorder %s23, 1
      %p88 = por %p86, %p87
      %p90 = scmp.ne.s32.totalorder %s75, %s89
      %p91 = scmp.eq.s32.totalorder %s23, 0
      %p92 = por %p90, %p91
      %s94 = sadd.s32 %s93, 1
      %p97 = scmp.eq.s32.totalorder %s17, 1
      %p98 = scmp.ne.s32.totalorder %s93, %s95
      %p99 = scmp.eq.s32.totalorder %s17, 0
      %p100 = por %p98, %p99
      %p101 = scmp.ne.s32.totalorder %s93, %s95
      %p102 = scmp.eq.s32.totalorder %s22, 1
      %p103 = por %p101, %p102
      %p104 = scmp.ne.s32.totalorder %s95, %s96
      %p105 = scmp.eq.s32.totalorder %s22, 0
      %p106 = por %p104, %p105
      %p107 = scmp.ne.s32.totalorder %s95, %s96
      %p108 = scmp.eq.s32.totalorder %s23, 1
      %p109 = por %p107, %p108
      %p111 = scmp.ne.s32.totalorder %s96, %s110
      %p112 = scmp.eq.s32.totalorder %s23, 0
      %p113 = por %p111, %p112
      %s115 = sadd.s32 %s114, 1
      %p118 = scmp.eq.s32.totalorder %s17, 1
      %p119 = scmp.ne.s32.totalorder %s114, %s116
      %p120 = scmp.eq.s32.totalorder %s17, 0
      %p121 = por %p119, %p120
      %p122 = scmp.ne.s32.totalorder %s114, %s116
      %p123 = scmp.eq.s32.totalorder %s22, 1
      %p124 = por %p122, %p123
      %p125 = scmp.ne.s32.totalorder %s116, %s117
      %p126 = scmp.eq.s32.totalorder %s22, 0
      %p127 = por %p125, %p126
      %p128 = scmp.ne.s32.totalorder %s116, %s117
      %p129 = scmp.eq.s32.totalorder %s23, 1
      %p130 = por %p128, %p129
      %p132 = scmp.ne.s32.totalorder %s117, %s131
      %p133 = scmp.eq.s32.totalorder %s23, 0
      %p134 = por %p132, %p133
      %s136 = sadd.s32 %s135, 1
      %p139 = scmp.eq.s32.totalorder %s17, 1
      %p140 = scmp.ne.s32.totalorder %s135, %s137
      %p141 = scmp.eq.s32.totalorder %s17, 0
      %p142 = por %p140, %p141
      %p143 = scmp.ne.s32.totalorder %s135, %s137
      %p144 = scmp.eq.s32.totalorder %s22, 1
      %p145 = por %p143, %p144
      %p146 = scmp.ne.s32.totalorder %s137, %s138
      %p147 = scmp.eq.s32.totalorder %s22, 0
      %p148 = por %p146, %p147
      %p149 = scmp.ne.s32.totalorder %s137, %s138
      %p150 = scmp.eq.s32.totalorder %s23, 1
      %p151 = por %p149, %p150
      %p153 = scmp.ne.s32.totalorder %s138, %s152
      %p154 = scmp.eq.s32.totalorder %s23, 0
      %p155 = por %p153, %p154
      %s157 = sadd.s32 %s156, 1
      %p160 = scmp.eq.s32.totalorder %s17, 1
      %p161 = scmp.ne.s32.totalorder %s156, %s158
      %p162 = scmp.eq.s32.totalorder %s17, 0
      %p163 = por %p161, %p162
      %p164 = scmp.ne.s32.totalorder %s156, %s158
      %p165 = scmp.eq.s32.totalorder %s22, 1
      %p166 = por %p164, %p165
      %p167 = scmp.ne.s32.totalorder %s158, %s159
      %p168 = scmp.eq.s32.totalorder %s22, 0
      %p169 = por %p167, %p168
      %p170 = scmp.ne.s32.totalorder %s158, %s159
      %p171 = scmp.eq.s32.totalorder %s23, 1
      %p172 = por %p170, %p171
      %p174 = scmp.ne.s32.totalorder %s159, %s173
      %p175 = scmp.eq.s32.totalorder %s23, 0
      %p176 = por %p174, %p175
      %s177 = ssub.s32 %s17, %s24
      %p178 = scmp.eq.s32.totalorder %s177, 0
      %s180 = sadd.s32 %s179, 1
      %s181 = scalar_select %p178, %s179, %s180
      %p184 = pneg %p178
      %p185 = scmp.eq.s32.totalorder %s17, 1
      %p186 = por %p184, %p185
      %p187 = scmp.ne.s32.totalorder %s179, %s182
      %p188 = scmp.eq.s32.totalorder %s17, 0
      %p189 = por %p187, %p188
      %p190 = scmp.ne.s32.totalorder %s179, %s182
      %p191 = scmp.eq.s32.totalorder %s22, 1
      %p192 = por %p190, %p191
      %p193 = scmp.ne.s32.totalorder %s182, %s183
      %p194 = scmp.eq.s32.totalorder %s22, 0
      %p195 = por %p193, %p194
      %p196 = scmp.ne.s32.totalorder %s182, %s183
      %p197 = scmp.eq.s32.totalorder %s23, 1
      %p198 = por %p196, %p197
      %p200 = scmp.ne.s32.totalorder %s183, %s199
      %p201 = scmp.eq.s32.totalorder %s23, 0
      %p202 = por %p200, %p201
      %p203 = scmp.le.s32.totalorder 1, %s17
      %p204 = scmp.lt.s32.totalorder %s17, 3
      %p205 = pnand %p203, %p204
      %p206 = pneg %p205
      // Predicated region
      $region9: #{tpu_custom_call.1} parent=5 // pred_check
        _
      $region10: #{tpu_custom_call.1} parent=5 // pred_check_branch
        %208 = sbr.rel (%p205) target = $region12
      $region11: #{tpu_custom_call.1} parent=5 // pred_region
        %s209 = ssub.s32 %s17, 1
        // Predicated region
        $region13: #{tpu_custom_call.1} parent=11 // pred_check
          %p210 = pneg %p64
        $region14: #{tpu_custom_call.1} parent=11 // pred_check_branch
          %212 = sbr.rel (%p210) target = $region16
        $region15: #{tpu_custom_call.1} parent=11 // pred_region
          _
        $region16: #{tpu_custom_call.1} parent=11 // pred_fallthru
          _
        // Predicated region
        $region17: #{tpu_custom_call.1} parent=11 // pred_check
          %p213 = pneg %p85
        $region18: #{tpu_custom_call.1} parent=11 // pred_check_branch
          %215 = sbr.rel (%p213) target = $region20
        $region19: #{tpu_custom_call.1} parent=11 // pred_region
          _
        $region20: #{tpu_custom_call.1} parent=11 // pred_fallthru
          _
        // Predicated region
        $region21: #{tpu_custom_call.1} parent=11 // pred_check
          %p216 = pneg %p106
        $region22: #{tpu_custom_call.1} parent=11 // pred_check_branch
          %218 = sbr.rel (%p216) target = $region24
        $region23: #{tpu_custom_call.1} parent=11 // pred_region
          _
        $region24: #{tpu_custom_call.1} parent=11 // pred_fallthru
          _
        // Predicated region
        $region25: #{tpu_custom_call.1} parent=11 // pred_check
          %p219 = pneg %p127
        $region26: #{tpu_custom_call.1} parent=11 // pred_check_branch
          %221 = sbr.rel (%p219) target = $region28
        $region27: #{tpu_custom_call.1} parent=11 // pred_region
          _
        $region28: #{tpu_custom_call.1} parent=11 // pred_fallthru
          _
        // Predicated region
        $region29: #{tpu_custom_call.1} parent=11 // pred_check
          %p222 = pneg %p148
        $region30: #{tpu_custom_call.1} parent=11 // pred_check_branch
          %224 = sbr.rel (%p222) target = $region32
        $region31: #{tpu_custom_call.1} parent=11 // pred_region
          _
        $region32: #{tpu_custom_call.1} parent=11 // pred_fallthru
          _
        // Predicated region
        $region33: #{tpu_custom_call.1} parent=11 // pred_check
          %p225 = pneg %p169
        $region34: #{tpu_custom_call.1} parent=11 // pred_check_branch
          %227 = sbr.rel (%p225) target = $region36
        $region35: #{tpu_custom_call.1} parent=11 // pred_region
          _
        $region36: #{tpu_custom_call.1} parent=11 // pred_fallthru
          _
      $region12: #{tpu_custom_call.1} parent=5 // pred_fallthru
        _
      %p228 = scmp.lt.s32.totalorder %s17, 2
      // Predicated region
      $region37: #{tpu_custom_call.1} parent=5 // pred_check
        %p229 = pneg %p228
      $region38: #{tpu_custom_call.1} parent=5 // pred_check_branch
        %231 = sbr.rel (%p229) target = $region40
      $region39: #{tpu_custom_call.1} parent=5 // pred_region
        // Predicated region
        $region41: #{tpu_custom_call.1} parent=39 // pred_check
          %p232 = pneg %p37
        $region42: #{tpu_custom_call.1} parent=39 // pred_check_branch
          %234 = sbr.rel (%p232) target = $region44
        $region43: #{tpu_custom_call.1} parent=39 // pred_region
          %s235 = smul.u32 128, %s17
          %p236 = scmp.lt.s32.totalorder %s235, 255
          %s237 = scalar_select %p236, %s235, 255
          %s238 = smul.addr %s237, 8
          %s239 = scalar_lea.vmem %s0, %s238
          %s240 = smul.u32 128, %s17
        $region44: #{tpu_custom_call.1} parent=39 // pred_fallthru
          _
      $region40: #{tpu_custom_call.1} parent=5 // pred_fallthru
        _
      %p241 = scmp.le.s32.totalorder 1, %s17
      %p242 = scmp.lt.s32.totalorder %s17, 3
      %p243 = pnand %p241, %p242
      %p244 = pneg %p243
      // Predicated region
      $region45: #{tpu_custom_call.1} parent=5 // pred_check
        _
      $region46: #{tpu_custom_call.1} parent=5 // pred_check_branch
        %246 = sbr.rel (%p243) target = $region48
      $region47: #{tpu_custom_call.1} parent=5 // pred_region
        %s247 = ssub.s32 %s17, 1
        %s248 = smul.u32 128, %s22
        %p249 = scmp.lt.s32.totalorder %s248, 255
        %s250 = scalar_select %p249, %s248, 255
        %s251 = smul.addr %s250, 8
        %s252 = scalar_lea.vmem %s0, %s251
        %p253 = pneg %p43
        %p254 = pneg %p40
        %p255 = pneg %p64
        %p256 = pneg %p61
        %p257 = pneg %p85
        %p258 = pneg %p82
        %p259 = pneg %p106
        %p260 = pneg %p103
        %p261 = pneg %p127
        %p262 = pneg %p124
        %p263 = pneg %p148
        %p264 = pneg %p145
        %p265 = pneg %p169
        %p266 = pneg %p166
        %p267 = pneg %p195
        %p268 = pneg %p192
        %s269 = sand.u32 %s182, 1
        %s270 = scalar_lea.sflag [#allocation4], %s269
        %s271 = sand.u32 %s182, 1
        %s272 = smul.addr %s271, 8
        %s273 = scalar_lea.vmem [#allocation3], %s272
        %s274 = smul.u32 128, %s22
        %p275 = scmp.lt.s32.totalorder %s274, 255
        %s276 = scalar_select %p275, %s274, 255
        %s277 = smul.addr %s276, 8
        %s278 = scalar_lea.vmem %s0, %s277
        %s279 = smul.u32 128, %s22
        %s280 = smul.u32 8, %s22
        %v281 = vld [vmem:[%s278] sm:$0xff]
        %v282 = vld [vmem:[%s278 + $0x8] sm:$0xff]
        %v283 = vld [vmem:[%s278 + $0x10] sm:$0xff]
        %v284 = vld [vmem:[%s278 + $0x18] sm:$0xff]
        %v285 = vld [vmem:[%s278 + $0x20] sm:$0xff]
        %v286 = vld [vmem:[%s278 + $0x28] sm:$0xff]
        %v287 = vld [vmem:[%s278 + $0x30] sm:$0xff]
        %v288 = vld [vmem:[%s278 + $0x38] sm:$0xff]
        %v289 = vld [vmem:[%s278 + $0x40] sm:$0xff]
        %v290 = vld [vmem:[%s278 + $0x48] sm:$0xff]
        %v291 = vld [vmem:[%s278 + $0x50] sm:$0xff]
        %v292 = vld [vmem:[%s278 + $0x58] sm:$0xff]
        %v293 = vld [vmem:[%s278 + $0x60] sm:$0xff]
        %v294 = vld [vmem:[%s278 + $0x68] sm:$0xff]
        %v295 = vld [vmem:[%s278 + $0x70] sm:$0xff]
        %v296 = vld [vmem:[%s278 + $0x78] sm:$0xff]
        %v297 = vld [vmem:[%s278 + $0x80] sm:$0xff]
        %v298 = vld [vmem:[%s278 + $0x88] sm:$0xff]
        %v299 = vld [vmem:[%s278 + $0x90] sm:$0xff]
        %v300 = vld [vmem:[%s278 + $0x98] sm:$0xff]
        %v301 = vld [vmem:[%s278 + $0xa0] sm:$0xff]
        %v302 = vld [vmem:[%s278 + $0xa8] sm:$0xff]
        %v303 = vld [vmem:[%s278 + $0xb0] sm:$0xff]
        %v304 = vld [vmem:[%s278 + $0xb8] sm:$0xff]
        %v305 = vld [vmem:[%s278 + $0xc0] sm:$0xff]
        %v306 = vld [vmem:[%s278 + $0xc8] sm:$0xff]
        %v307 = vld [vmem:[%s278 + $0xd0] sm:$0xff]
        %v308 = vld [vmem:[%s278 + $0xd8] sm:$0xff]
        %v309 = vld [vmem:[%s278 + $0xe0] sm:$0xff]
        %v310 = vld [vmem:[%s278 + $0xe8] sm:$0xff]
        %v311 = vld [vmem:[%s278 + $0xf0] sm:$0xff]
        %v312 = vld [vmem:[%s278 + $0xf8] sm:$0xff]
        %v313 = vld [vmem:[%s278 + $0x100] sm:$0xff]
        %v314 = vld [vmem:[%s278 + $0x108] sm:$0xff]
        %v315 = vld [vmem:[%s278 + $0x110] sm:$0xff]
        %v316 = vld [vmem:[%s278 + $0x118] sm:$0xff]
        %v317 = vld [vmem:[%s278 + $0x120] sm:$0xff]
        %v318 = vld [vmem:[%s278 + $0x128] sm:$0xff]
        %v319 = vld [vmem:[%s278 + $0x130] sm:$0xff]
        %v320 = vld [vmem:[%s278 + $0x138] sm:$0xff]
        %v321 = vld [vmem:[%s278 + $0x140] sm:$0xff]
        %v322 = vld [vmem:[%s278 + $0x148] sm:$0xff]
        %v323 = vld [vmem:[%s278 + $0x150] sm:$0xff]
        %v324 = vld [vmem:[%s278 + $0x158] sm:$0xff]
        %v325 = vld [vmem:[%s278 + $0x160] sm:$0xff]
        %v326 = vld [vmem:[%s278 + $0x168] sm:$0xff]
        %v327 = vld [vmem:[%s278 + $0x170] sm:$0xff]
        %v328 = vld [vmem:[%s278 + $0x178] sm:$0xff]
        %v329 = vld [vmem:[%s278 + $0x180] sm:$0xff]
        %v330 = vld [vmem:[%s278 + $0x188] sm:$0xff]
        %v331 = vld [vmem:[%s278 + $0x190] sm:$0xff]
        %v332 = vld [vmem:[%s278 + $0x198] sm:$0xff]
        %v333 = vld [vmem:[%s278 + $0x1a0] sm:$0xff]
        %v334 = vld [vmem:[%s278 + $0x1a8] sm:$0xff]
        %v335 = vld [vmem:[%s278 + $0x1b0] sm:$0xff]
        %v336 = vld [vmem:[%s278 + $0x1b8] sm:$0xff]
        %v337 = vld [vmem:[%s278 + $0x1c0] sm:$0xff]
        %v338 = vld [vmem:[%s278 + $0x1c8] sm:$0xff]
        %v339 = vld [vmem:[%s278 + $0x1d0] sm:$0xff]
        %v340 = vld [vmem:[%s278 + $0x1d8] sm:$0xff]
        %v341 = vld [vmem:[%s278 + $0x1e0] sm:$0xff]
        %v342 = vld [vmem:[%s278 + $0x1e8] sm:$0xff]
        %v343 = vld [vmem:[%s278 + $0x1f0] sm:$0xff]
        %v344 = vld [vmem:[%s278 + $0x1f8] sm:$0xff]
        %v345 = vld [vmem:[%s278 + $0x200] sm:$0xff]
        %v346 = vld [vmem:[%s278 + $0x208] sm:$0xff]
        %v347 = vld [vmem:[%s278 + $0x210] sm:$0xff]
        %v348 = vld [vmem:[%s278 + $0x218] sm:$0xff]
        %v349 = vld [vmem:[%s278 + $0x220] sm:$0xff]
        %v350 = vld [vmem:[%s278 + $0x228] sm:$0xff]
        %v351 = vld [vmem:[%s278 + $0x230] sm:$0xff]
        %v352 = vld [vmem:[%s278 + $0x238] sm:$0xff]
        %v353 = vld [vmem:[%s278 + $0x240] sm:$0xff]
        %v354 = vld [vmem:[%s278 + $0x248] sm:$0xff]
        %v355 = vld [vmem:[%s278 + $0x250] sm:$0xff]
        %v356 = vld [vmem:[%s278 + $0x258] sm:$0xff]
        %v357 = vld [vmem:[%s278 + $0x260] sm:$0xff]
        %v358 = vld [vmem:[%s278 + $0x268] sm:$0xff]
        %v359 = vld [vmem:[%s278 + $0x270] sm:$0xff]
        %v360 = vld [vmem:[%s278 + $0x278] sm:$0xff]
        %v361 = vld [vmem:[%s278 + $0x280] sm:$0xff]
        %v362 = vld [vmem:[%s278 + $0x288] sm:$0xff]
        %v363 = vld [vmem:[%s278 + $0x290] sm:$0xff]
        %v364 = vld [vmem:[%s278 + $0x298] sm:$0xff]
        %v365 = vld [vmem:[%s278 + $0x2a0] sm:$0xff]
        %v366 = vld [vmem:[%s278 + $0x2a8] sm:$0xff]
        %v367 = vld [vmem:[%s278 + $0x2b0] sm:$0xff]
        %v368 = vld [vmem:[%s278 + $0x2b8] sm:$0xff]
        %v369 = vld [vmem:[%s278 + $0x2c0] sm:$0xff]
        %v370 = vld [vmem:[%s278 + $0x2c8] sm:$0xff]
        %v371 = vld [vmem:[%s278 + $0x2d0] sm:$0xff]
        %v372 = vld [vmem:[%s278 + $0x2d8] sm:$0xff]
        %v373 = vld [vmem:[%s278 + $0x2e0] sm:$0xff]
        %v374 = vld [vmem:[%s278 + $0x2e8] sm:$0xff]
        %v375 = vld [vmem:[%s278 + $0x2f0] sm:$0xff]
        %v376 = vld [vmem:[%s278 + $0x2f8] sm:$0xff]
        %v377 = vld [vmem:[%s278 + $0x300] sm:$0xff]
        %v378 = vld [vmem:[%s278 + $0x308] sm:$0xff]
        %v379 = vld [vmem:[%s278 + $0x310] sm:$0xff]
        %v380 = vld [vmem:[%s278 + $0x318] sm:$0xff]
        %v381 = vld [vmem:[%s278 + $0x320] sm:$0xff]
        %v382 = vld [vmem:[%s278 + $0x328] sm:$0xff]
        %v383 = vld [vmem:[%s278 + $0x330] sm:$0xff]
        %v384 = vld [vmem:[%s278 + $0x338] sm:$0xff]
        %v385 = vld [vmem:[%s278 + $0x340] sm:$0xff]
        %v386 = vld [vmem:[%s278 + $0x348] sm:$0xff]
        %v387 = vld [vmem:[%s278 + $0x350] sm:$0xff]
        %v388 = vld [vmem:[%s278 + $0x358] sm:$0xff]
        %v389 = vld [vmem:[%s278 + $0x360] sm:$0xff]
        %v390 = vld [vmem:[%s278 + $0x368] sm:$0xff]
        %v391 = vld [vmem:[%s278 + $0x370] sm:$0xff]
        %v392 = vld [vmem:[%s278 + $0x378] sm:$0xff]
        %v393 = vld [vmem:[%s278 + $0x380] sm:$0xff]
        %v394 = vld [vmem:[%s278 + $0x388] sm:$0xff]
        %v395 = vld [vmem:[%s278 + $0x390] sm:$0xff]
        %v396 = vld [vmem:[%s278 + $0x398] sm:$0xff]
        %v397 = vld [vmem:[%s278 + $0x3a0] sm:$0xff]
        %v398 = vld [vmem:[%s278 + $0x3a8] sm:$0xff]
        %v399 = vld [vmem:[%s278 + $0x3b0] sm:$0xff]
        %v400 = vld [vmem:[%s278 + $0x3b8] sm:$0xff]
        %v401 = vld [vmem:[%s278 + $0x3c0] sm:$0xff]
        %v402 = vld [vmem:[%s278 + $0x3c8] sm:$0xff]
        %v403 = vld [vmem:[%s278 + $0x3d0] sm:$0xff]
        %v404 = vld [vmem:[%s278 + $0x3d8] sm:$0xff]
        %v405 = vld [vmem:[%s278 + $0x3e0] sm:$0xff]
        %v406 = vld [vmem:[%s278 + $0x3e8] sm:$0xff]
        %v407 = vld [vmem:[%s278 + $0x3f0] sm:$0xff]
        %v408 = vld [vmem:[%s278 + $0x3f8] sm:$0xff]
        %v409 = vld [vmem:[%s1] sm:$0xff]
        %v410 = vld [vmem:[%s1 + $0x8] sm:$0xff]
        %v411 = vld [vmem:[%s1 + $0x10] sm:$0xff]
        %v412 = vld [vmem:[%s1 + $0x18] sm:$0xff]
        %v413 = vld [vmem:[%s1 + $0x20] sm:$0xff]
        %v414 = vld [vmem:[%s1 + $0x28] sm:$0xff]
        %v415 = vld [vmem:[%s1 + $0x30] sm:$0xff]
        %v416 = vld [vmem:[%s1 + $0x38] sm:$0xff]
        %v417 = vld [vmem:[%s1 + $0x40] sm:$0xff]
        %v418 = vld [vmem:[%s1 + $0x48] sm:$0xff]
        %v419 = vld [vmem:[%s1 + $0x50] sm:$0xff]
        %v420 = vld [vmem:[%s1 + $0x58] sm:$0xff]
        %v421 = vld [vmem:[%s1 + $0x60] sm:$0xff]
        %v422 = vld [vmem:[%s1 + $0x68] sm:$0xff]
        %v423 = vld [vmem:[%s1 + $0x70] sm:$0xff]
        %v424 = vld [vmem:[%s1 + $0x78] sm:$0xff]
        %v425 = vld [vmem:[%s2] sm:$0xff]
        %v426 = vld [vmem:[%s2 + $0x8] sm:$0xff]
        %v427 = vld [vmem:[%s2 + $0x10] sm:$0xff]
        %v428 = vld [vmem:[%s2 + $0x18] sm:$0xff]
        %v429 = vld [vmem:[%s2 + $0x20] sm:$0xff]
        %v430 = vld [vmem:[%s2 + $0x28] sm:$0xff]
        %v431 = vld [vmem:[%s2 + $0x30] sm:$0xff]
        %v432 = vld [vmem:[%s2 + $0x38] sm:$0xff]
        %v433 = vld [vmem:[%s2 + $0x40] sm:$0xff]
        %v434 = vld [vmem:[%s2 + $0x48] sm:$0xff]
        %v435 = vld [vmem:[%s2 + $0x50] sm:$0xff]
        %v436 = vld [vmem:[%s2 + $0x58] sm:$0xff]
        %v437 = vld [vmem:[%s2 + $0x60] sm:$0xff]
        %v438 = vld [vmem:[%s2 + $0x68] sm:$0xff]
        %v439 = vld [vmem:[%s2 + $0x70] sm:$0xff]
        %v440 = vld [vmem:[%s2 + $0x78] sm:$0xff]
        %442 = vset.pattern.permute.xlu0 0
        %443 = vperm.xlu0 %442, %v425
        %v444 = vpop.permute.xlu0 %443
        %447 = vset.pattern.permute.xlu0 0
        %448 = vperm.xlu0 %447, %v426
        %v449 = vpop.permute.xlu0 %448
        %452 = vset.pattern.permute.xlu0 0
        %453 = vperm.xlu0 %452, %v427
        %v454 = vpop.permute.xlu0 %453
        %457 = vset.pattern.permute.xlu0 0
        %458 = vperm.xlu0 %457, %v428
        %v459 = vpop.permute.xlu0 %458
        %462 = vset.pattern.permute.xlu0 0
        %463 = vperm.xlu0 %462, %v429
        %v464 = vpop.permute.xlu0 %463
        %467 = vset.pattern.permute.xlu0 0
        %468 = vperm.xlu0 %467, %v430
        %v469 = vpop.permute.xlu0 %468
        %472 = vset.pattern.permute.xlu0 0
        %473 = vperm.xlu0 %472, %v431
        %v474 = vpop.permute.xlu0 %473
        %477 = vset.pattern.permute.xlu0 0
        %478 = vperm.xlu0 %477, %v432
        %v479 = vpop.permute.xlu0 %478
        %482 = vset.pattern.permute.xlu0 0
        %483 = vperm.xlu0 %482, %v433
        %v484 = vpop.permute.xlu0 %483
        %487 = vset.pattern.permute.xlu0 0
        %488 = vperm.xlu0 %487, %v434
        %v489 = vpop.permute.xlu0 %488
        %492 = vset.pattern.permute.xlu0 0
        %493 = vperm.xlu0 %492, %v435
        %v494 = vpop.permute.xlu0 %493
        %497 = vset.pattern.permute.xlu0 0
        %498 = vperm.xlu0 %497, %v436
        %v499 = vpop.permute.xlu0 %498
        %502 = vset.pattern.permute.xlu0 0
        %503 = vperm.xlu0 %502, %v437
        %v504 = vpop.permute.xlu0 %503
        %507 = vset.pattern.permute.xlu0 0
        %508 = vperm.xlu0 %507, %v438
        %v509 = vpop.permute.xlu0 %508
        %512 = vset.pattern.permute.xlu0 0
        %513 = vperm.xlu0 %512, %v439
        %v514 = vpop.permute.xlu0 %513
        %517 = vset.pattern.permute.xlu0 0
        %518 = vperm.xlu0 %517, %v440
        %v519 = vpop.permute.xlu0 %518
        %vm521 = vcmask 261120
        %v523 = vsel %vm521, %v409, 0
        %v526 = vsel %vm521, %v410, 0
        %v529 = vsel %vm521, %v411, 0
        %v532 = vsel %vm521, %v412, 0
        %v535 = vsel %vm521, %v413, 0
        %v538 = vsel %vm521, %v414, 0
        %v541 = vsel %vm521, %v415, 0
        %v544 = vsel %vm521, %v416, 0
        %v547 = vsel %vm521, %v417, 0
        %v550 = vsel %vm521, %v418, 0
        %v553 = vsel %vm521, %v419, 0
        %v556 = vsel %vm521, %v420, 0
        %v559 = vsel %vm521, %v421, 0
        %v562 = vsel %vm521, %v422, 0
        %v565 = vsel %vm521, %v423, 0
        %v568 = vsel %vm521, %v424, 0
        %v571 = vsel %vm521, %v281, 0
        %v574 = vsel %vm521, %v282, 0
        %v577 = vsel %vm521, %v283, 0
        %v580 = vsel %vm521, %v284, 0
        %v583 = vsel %vm521, %v285, 0
        %v586 = vsel %vm521, %v286, 0
        %v589 = vsel %vm521, %v287, 0
        %v592 = vsel %vm521, %v288, 0
        %v595 = vsel %vm521, %v289, 0
        %v598 = vsel %vm521, %v290, 0
        %v601 = vsel %vm521, %v291, 0
        %v604 = vsel %vm521, %v292, 0
        %v607 = vsel %vm521, %v293, 0
        %v610 = vsel %vm521, %v294, 0
        %v613 = vsel %vm521, %v295, 0
        %v616 = vsel %vm521, %v296, 0
        %v619 = vsel %vm521, %v297, 0
        %v622 = vsel %vm521, %v298, 0
        %v625 = vsel %vm521, %v299, 0
        %v628 = vsel %vm521, %v300, 0
        %v631 = vsel %vm521, %v301, 0
        %v634 = vsel %vm521, %v302, 0
        %v637 = vsel %vm521, %v303, 0
        %v640 = vsel %vm521, %v304, 0
        %v643 = vsel %vm521, %v305, 0
        %v646 = vsel %vm521, %v306, 0
        %v649 = vsel %vm521, %v307, 0
        %v652 = vsel %vm521, %v308, 0
        %v655 = vsel %vm521, %v309, 0
        %v658 = vsel %vm521, %v310, 0
        %v661 = vsel %vm521, %v311, 0
        %v664 = vsel %vm521, %v312, 0
        %v667 = vsel %vm521, %v313, 0
        %v670 = vsel %vm521, %v314, 0
        %v673 = vsel %vm521, %v315, 0
        %v676 = vsel %vm521, %v316, 0
        %v679 = vsel %vm521, %v317, 0
        %v682 = vsel %vm521, %v318, 0
        %v685 = vsel %vm521, %v319, 0
        %v688 = vsel %vm521, %v320, 0
        %v691 = vsel %vm521, %v321, 0
        %v694 = vsel %vm521, %v322, 0
        %v697 = vsel %vm521, %v323, 0
        %v700 = vsel %vm521, %v324, 0
        %v703 = vsel %vm521, %v325, 0
        %v706 = vsel %vm521, %v326, 0
        %v709 = vsel %vm521, %v327, 0
        %v712 = vsel %vm521, %v328, 0
        %v715 = vsel %vm521, %v329, 0
        %v718 = vsel %vm521, %v330, 0
        %v721 = vsel %vm521, %v331, 0
        %v724 = vsel %vm521, %v332, 0
        %v727 = vsel %vm521, %v333, 0
        %v730 = vsel %vm521, %v334, 0
        %v733 = vsel %vm521, %v335, 0
        %v736 = vsel %vm521, %v336, 0
        %v739 = vsel %vm521, %v337, 0
        %v742 = vsel %vm521, %v338, 0
        %v745 = vsel %vm521, %v339, 0
        %v748 = vsel %vm521, %v340, 0
        %v751 = vsel %vm521, %v341, 0
        %v754 = vsel %vm521, %v342, 0
        %v757 = vsel %vm521, %v343, 0
        %v760 = vsel %vm521, %v344, 0
        %v763 = vsel %vm521, %v345, 0
        %v766 = vsel %vm521, %v346, 0
        %v769 = vsel %vm521, %v347, 0
        %v772 = vsel %vm521, %v348, 0
        %v775 = vsel %vm521, %v349, 0
        %v778 = vsel %vm521, %v350, 0
        %v781 = vsel %vm521, %v351, 0
        %v784 = vsel %vm521, %v352, 0
        %v787 = vsel %vm521, %v353, 0
        %v790 = vsel %vm521, %v354, 0
        %v793 = vsel %vm521, %v355, 0
        %v796 = vsel %vm521, %v356, 0
        %v799 = vsel %vm521, %v357, 0
        %v802 = vsel %vm521, %v358, 0
        %v805 = vsel %vm521, %v359, 0
        %v808 = vsel %vm521, %v360, 0
        %v811 = vsel %vm521, %v361, 0
        %v814 = vsel %vm521, %v362, 0
        %v817 = vsel %vm521, %v363, 0
        %v820 = vsel %vm521, %v364, 0
        %v823 = vsel %vm521, %v365, 0
        %v826 = vsel %vm521, %v366, 0
        %v829 = vsel %vm521, %v367, 0
        %v832 = vsel %vm521, %v368, 0
        %v835 = vsel %vm521, %v369, 0
        %v838 = vsel %vm521, %v370, 0
        %v841 = vsel %vm521, %v371, 0
        %v844 = vsel %vm521, %v372, 0
        %v847 = vsel %vm521, %v373, 0
        %v850 = vsel %vm521, %v374, 0
        %v853 = vsel %vm521, %v375, 0
        %v856 = vsel %vm521, %v376, 0
        %v859 = vsel %vm521, %v377, 0
        %v862 = vsel %vm521, %v378, 0
        %v865 = vsel %vm521, %v379, 0
        %v868 = vsel %vm521, %v380, 0
        %v871 = vsel %vm521, %v381, 0
        %v874 = vsel %vm521, %v382, 0
        %v877 = vsel %vm521, %v383, 0
        %v880 = vsel %vm521, %v384, 0
        %v883 = vsel %vm521, %v385, 0
        %v886 = vsel %vm521, %v386, 0
        %v889 = vsel %vm521, %v387, 0
        %v892 = vsel %vm521, %v388, 0
        %v895 = vsel %vm521, %v389, 0
        %v898 = vsel %vm521, %v390, 0
        %v901 = vsel %vm521, %v391, 0
        %v904 = vsel %vm521, %v392, 0
        %v907 = vsel %vm521, %v393, 0
        %v910 = vsel %vm521, %v394, 0
        %v913 = vsel %vm521, %v395, 0
        %v916 = vsel %vm521, %v396, 0
        %v919 = vsel %vm521, %v397, 0
        %v922 = vsel %vm521, %v398, 0
        %v925 = vsel %vm521, %v399, 0
        %v928 = vsel %vm521, %v400, 0
        %v931 = vsel %vm521, %v401, 0
        %v934 = vsel %vm521, %v402, 0
        %v937 = vsel %vm521, %v403, 0
        %v940 = vsel %vm521, %v404, 0
        %v943 = vsel %vm521, %v405, 0
        %v946 = vsel %vm521, %v406, 0
        %v949 = vsel %vm521, %v407, 0
        %v952 = vsel %vm521, %v408, 0
        %954 = vmatprep.subr.mxu0 0.0
        %955 = vmatpush1.xpose.msra.mxu0 %v616
        %956 = vmatprep.subr.mxu0 0.0
        %957 = vmatpush1.xpose.msra.mxu0 %v613
        %958 = vmatprep.subr.mxu0 0.0
        %959 = vmatpush1.xpose.msra.mxu0 %v610
        %960 = vmatprep.subr.mxu0 0.0
        %961 = vmatpush1.xpose.msra.mxu0 %v607
        %962 = vmatprep.subr.mxu0 0.0
        %963 = vmatpush1.xpose.msra.mxu0 %v604
        %964 = vmatprep.subr.mxu0 0.0
        %965 = vmatpush1.xpose.msra.mxu0 %v601
        %966 = vmatprep.subr.mxu0 0.0
        %967 = vmatpush1.xpose.msra.mxu0 %v598
        %968 = vmatprep.subr.mxu0 0.0
        %969 = vmatpush1.xpose.msra.mxu0 %v595
        %970 = vmatprep.subr.mxu0 0.0
        %971 = vmatpush1.xpose.msra.mxu0 %v592
        %972 = vmatprep.subr.mxu0 0.0
        %973 = vmatpush1.xpose.msra.mxu0 %v589
        %974 = vmatprep.subr.mxu0 0.0
        %975 = vmatpush1.xpose.msra.mxu0 %v586
        %976 = vmatprep.subr.mxu0 0.0
        %977 = vmatpush1.xpose.msra.mxu0 %v583
        %978 = vmatprep.subr.mxu0 0.0
        %979 = vmatpush1.xpose.msra.mxu0 %v580
        %980 = vmatprep.subr.mxu0 0.0
        %981 = vmatpush1.xpose.msra.mxu0 %v577
        %982 = vmatprep.subr.mxu0 0.0
        %983 = vmatpush1.xpose.msra.mxu0 %v574
        %984 = vmatprep.subr.mxu0 0.0
        %985 = vmatpush1.xpose.msra.mxu0 %v571
        %986 = vmatprep.subr.mxu0 0.0
        %987 = vmatpush2.xpose.msra.mxu0 %v664
        %988 = vmatprep.subr.mxu0 0.0
        %989 = vmatpush2.xpose.msra.mxu0 %v661
        %990 = vmatprep.subr.mxu0 0.0
        %991 = vmatpush2.xpose.msra.mxu0 %v658
        %992 = vmatprep.subr.mxu0 0.0
        %993 = vmatpush2.xpose.msra.mxu0 %v655
        %994 = vmatprep.subr.mxu0 0.0
        %995 = vmatpush2.xpose.msra.mxu0 %v652
        %996 = vmatprep.subr.mxu0 0.0
        %997 = vmatpush2.xpose.msra.mxu0 %v649
        %998 = vmatprep.subr.mxu0 0.0
        %999 = vmatpush2.xpose.msra.mxu0 %v646
        %1000 = vmatprep.subr.mxu0 0.0
        %1001 = vmatpush2.xpose.msra.mxu0 %v643
        %1002 = vmatprep.subr.mxu0 0.0
        %1003 = vmatpush2.xpose.msra.mxu0 %v640
        %1004 = vmatprep.subr.mxu0 0.0
        %1005 = vmatpush2.xpose.msra.mxu0 %v637
        %1006 = vmatprep.subr.mxu0 0.0
        %1007 = vmatpush2.xpose.msra.mxu0 %v634
        %1008 = vmatprep.subr.mxu0 0.0
        %1009 = vmatpush2.xpose.msra.mxu0 %v631
        %1010 = vmatprep.subr.mxu0 0.0
        %1011 = vmatpush2.xpose.msra.mxu0 %v628
        %1012 = vmatprep.subr.mxu0 0.0
        %1013 = vmatpush2.xpose.msra.mxu0 %v625
        %1014 = vmatprep.subr.mxu0 0.0
        %1015 = vmatpush2.xpose.msra.mxu0 %v622
        %1016 = vmatprep.subr.mxu0 0.0
        %1017 = vmatpush2.xpose.msra.mxu0 %v619
        %1018 = vmatprep.mubr.f32.mxu0 0.0
        %1019 = vmatmul.mubr.f32.gmra.mxu0 %v523
        %v1020 = vpop.f32.mrf.mxu0
        %v1021 = vadd.f32 %v444, %v1020
        %v1022 = vpop.f32.mrf.mxu0
        %v1023 = vadd.f32 %v444, %v1022
        %1024 = vmatprep.mubr.f32.mxu0 0.0
        %1025 = vmatmul.mubr.f32.gmra.mxu0 %v526
        %v1026 = vpop.f32.mrf.mxu0
        %v1027 = vadd.f32 %v449, %v1026
        %v1028 = vpop.f32.mrf.mxu0
        %v1029 = vadd.f32 %v449, %v1028
        %1030 = vmatprep.mubr.f32.mxu0 0.0
        %1031 = vmatmul.mubr.f32.gmra.mxu0 %v529
        %v1032 = vpop.f32.mrf.mxu0
        %v1033 = vadd.f32 %v454, %v1032
        %v1034 = vpop.f32.mrf.mxu0
        %v1035 = vadd.f32 %v454, %v1034
        %1036 = vmatprep.mubr.f32.mxu0 0.0
        %1037 = vmatmul.mubr.f32.gmra.mxu0 %v532
        %v1038 = vpop.f32.mrf.mxu0
        %v1039 = vadd.f32 %v459, %v1038
        %v1040 = vpop.f32.mrf.mxu0
        %v1041 = vadd.f32 %v459, %v1040
        %1042 = vmatprep.mubr.f32.mxu0 0.0
        %1043 = vmatmul.mubr.f32.gmra.mxu0 %v535
        %v1044 = vpop.f32.mrf.mxu0
        %v1045 = vadd.f32 %v464, %v1044
        %v1046 = vpop.f32.mrf.mxu0
        %v1047 = vadd.f32 %v464, %v1046
        %1048 = vmatprep.mubr.f32.mxu0 0.0
        %1049 = vmatmul.mubr.f32.gmra.mxu0 %v538
        %v1050 = vpop.f32.mrf.mxu0
        %v1051 = vadd.f32 %v469, %v1050
        %v1052 = vpop.f32.mrf.mxu0
        %v1053 = vadd.f32 %v469, %v1052
        %1054 = vmatprep.mubr.f32.mxu0 0.0
        %1055 = vmatmul.mubr.f32.gmra.mxu0 %v541
        %v1056 = vpop.f32.mrf.mxu0
        %v1057 = vadd.f32 %v474, %v1056
        %v1058 = vpop.f32.mrf.mxu0
        %v1059 = vadd.f32 %v474, %v1058
        %1060 = vmatprep.mubr.f32.mxu0 0.0
        %1061 = vmatmul.mubr.f32.gmra.mxu0 %v544
        %v1062 = vpop.f32.mrf.mxu0
        %v1063 = vadd.f32 %v479, %v1062
        %v1064 = vpop.f32.mrf.mxu0
        %v1065 = vadd.f32 %v479, %v1064
        %1066 = vmatprep.mubr.f32.mxu0 0.0
        %1067 = vmatmul.mubr.f32.gmra.mxu0 %v547
        %v1068 = vpop.f32.mrf.mxu0
        %v1069 = vadd.f32 %v484, %v1068
        %v1070 = vpop.f32.mrf.mxu0
        %v1071 = vadd.f32 %v484, %v1070
        %1072 = vmatprep.mubr.f32.mxu0 0.0
        %1073 = vmatmul.mubr.f32.gmra.mxu0 %v550
        %v1074 = vpop.f32.mrf.mxu0
        %v1075 = vadd.f32 %v489, %v1074
        %v1076 = vpop.f32.mrf.mxu0
        %v1077 = vadd.f32 %v489, %v1076
        %1078 = vmatprep.mubr.f32.mxu0 0.0
        %1079 = vmatmul.mubr.f32.gmra.mxu0 %v553
        %v1080 = vpop.f32.mrf.mxu0
        %v1081 = vadd.f32 %v494, %v1080
        %v1082 = vpop.f32.mrf.mxu0
        %v1083 = vadd.f32 %v494, %v1082
        %1084 = vmatprep.mubr.f32.mxu0 0.0
        %1085 = vmatmul.mubr.f32.gmra.mxu0 %v556
        %v1086 = vpop.f32.mrf.mxu0
        %v1087 = vadd.f32 %v499, %v1086
        %v1088 = vpop.f32.mrf.mxu0
        %v1089 = vadd.f32 %v499, %v1088
        %1090 = vmatprep.mubr.f32.mxu0 0.0
        %1091 = vmatmul.mubr.f32.gmra.mxu0 %v559
        %v1092 = vpop.f32.mrf.mxu0
        %v1093 = vadd.f32 %v504, %v1092
        %v1094 = vpop.f32.mrf.mxu0
        %v1095 = vadd.f32 %v504, %v1094
        %1096 = vmatprep.mubr.f32.mxu0 0.0
        %1097 = vmatmul.mubr.f32.gmra.mxu0 %v562
        %v1098 = vpop.f32.mrf.mxu0
        %v1099 = vadd.f32 %v509, %v1098
        %v1100 = vpop.f32.mrf.mxu0
        %v1101 = vadd.f32 %v509, %v1100
        %1102 = vmatprep.mubr.f32.mxu0 0.0
        %1103 = vmatmul.mubr.f32.gmra.mxu0 %v565
        %v1104 = vpop.f32.mrf.mxu0
        %v1105 = vadd.f32 %v514, %v1104
        %v1106 = vpop.f32.mrf.mxu0
        %v1107 = vadd.f32 %v514, %v1106
        %1108 = vmatprep.mubr.f32.mxu0 0.0
        %1109 = vmatmul.mubr.f32.gmra.mxu0 %v568
        %v1110 = vpop.f32.mrf.mxu0
        %v1111 = vadd.f32 %v519, %v1110
        %v1112 = vpop.f32.mrf.mxu0
        %v1113 = vadd.f32 %v519, %v1112
        %1114 = vdwg.mxu0
        %1115 = vmatprep.subr.mxu0 0.0
        %1116 = vmatpush1.xpose.msra.mxu0 %v712
        %1117 = vmatprep.subr.mxu0 0.0
        %1118 = vmatpush1.xpose.msra.mxu0 %v709
        %1119 = vmatprep.subr.mxu0 0.0
        %1120 = vmatpush1.xpose.msra.mxu0 %v706
        %1121 = vmatprep.subr.mxu0 0.0
        %1122 = vmatpush1.xpose.msra.mxu0 %v703
        %1123 = vmatprep.subr.mxu0 0.0
        %1124 = vmatpush1.xpose.msra.mxu0 %v700
        %1125 = vmatprep.subr.mxu0 0.0
        %1126 = vmatpush1.xpose.msra.mxu0 %v697
        %1127 = vmatprep.subr.mxu0 0.0
        %1128 = vmatpush1.xpose.msra.mxu0 %v694
        %1129 = vmatprep.subr.mxu0 0.0
        %1130 = vmatpush1.xpose.msra.mxu0 %v691
        %1131 = vmatprep.subr.mxu0 0.0
        %1132 = vmatpush1.xpose.msra.mxu0 %v688
        %1133 = vmatprep.subr.mxu0 0.0
        %1134 = vmatpush1.xpose.msra.mxu0 %v685
        %1135 = vmatprep.subr.mxu0 0.0
        %1136 = vmatpush1.xpose.msra.mxu0 %v682
        %1137 = vmatprep.subr.mxu0 0.0
        %1138 = vmatpush1.xpose.msra.mxu0 %v679
        %1139 = vmatprep.subr.mxu0 0.0
        %1140 = vmatpush1.xpose.msra.mxu0 %v676
        %1141 = vmatprep.subr.mxu0 0.0
        %1142 = vmatpush1.xpose.msra.mxu0 %v673
        %1143 = vmatprep.subr.mxu0 0.0
        %1144 = vmatpush1.xpose.msra.mxu0 %v670
        %1145 = vmatprep.subr.mxu0 0.0
        %1146 = vmatpush1.xpose.msra.mxu0 %v667
        %1147 = vmatprep.subr.mxu0 0.0
        %1148 = vmatpush2.xpose.msra.mxu0 %v760
        %1149 = vmatprep.subr.mxu0 0.0
        %1150 = vmatpush2.xpose.msra.mxu0 %v757
        %1151 = vmatprep.subr.mxu0 0.0
        %1152 = vmatpush2.xpose.msra.mxu0 %v754
        %1153 = vmatprep.subr.mxu0 0.0
        %1154 = vmatpush2.xpose.msra.mxu0 %v751
        %1155 = vmatprep.subr.mxu0 0.0
        %1156 = vmatpush2.xpose.msra.mxu0 %v748
        %1157 = vmatprep.subr.mxu0 0.0
        %1158 = vmatpush2.xpose.msra.mxu0 %v745
        %1159 = vmatprep.subr.mxu0 0.0
        %1160 = vmatpush2.xpose.msra.mxu0 %v742
        %1161 = vmatprep.subr.mxu0 0.0
        %1162 = vmatpush2.xpose.msra.mxu0 %v739
        %1163 = vmatprep.subr.mxu0 0.0
        %1164 = vmatpush2.xpose.msra.mxu0 %v736
        %1165 = vmatprep.subr.mxu0 0.0
        %1166 = vmatpush2.xpose.msra.mxu0 %v733
        %1167 = vmatprep.subr.mxu0 0.0
        %1168 = vmatpush2.xpose.msra.mxu0 %v730
        %1169 = vmatprep.subr.mxu0 0.0
        %1170 = vmatpush2.xpose.msra.mxu0 %v727
        %1171 = vmatprep.subr.mxu0 0.0
        %1172 = vmatpush2.xpose.msra.mxu0 %v724
        %1173 = vmatprep.subr.mxu0 0.0
        %1174 = vmatpush2.xpose.msra.mxu0 %v721
        %1175 = vmatprep.subr.mxu0 0.0
        %1176 = vmatpush2.xpose.msra.mxu0 %v718
        %1177 = vmatprep.subr.mxu0 0.0
        %1178 = vmatpush2.xpose.msra.mxu0 %v715
        %1179 = vmatprep.mubr.f32.mxu0 0.0
        %1180 = vmatmul.mubr.f32.gmra.mxu0 %v523
        %v1181 = vpop.f32.mrf.mxu0
        %v1182 = vadd.f32 %v444, %v1181
        %v1183 = vpop.f32.mrf.mxu0
        %v1184 = vadd.f32 %v444, %v1183
        %1185 = vmatprep.mubr.f32.mxu0 0.0
        %1186 = vmatmul.mubr.f32.gmra.mxu0 %v526
        %v1187 = vpop.f32.mrf.mxu0
        %v1188 = vadd.f32 %v449, %v1187
        %v1189 = vpop.f32.mrf.mxu0
        %v1190 = vadd.f32 %v449, %v1189
        %1191 = vmatprep.mubr.f32.mxu0 0.0
        %1192 = vmatmul.mubr.f32.gmra.mxu0 %v529
        %v1193 = vpop.f32.mrf.mxu0
        %v1194 = vadd.f32 %v454, %v1193
        %v1195 = vpop.f32.mrf.mxu0
        %v1196 = vadd.f32 %v454, %v1195
        %1197 = vmatprep.mubr.f32.mxu0 0.0
        %1198 = vmatmul.mubr.f32.gmra.mxu0 %v532
        %v1199 = vpop.f32.mrf.mxu0
        %v1200 = vadd.f32 %v459, %v1199
        %v1201 = vpop.f32.mrf.mxu0
        %v1202 = vadd.f32 %v459, %v1201
        %1203 = vmatprep.mubr.f32.mxu0 0.0
        %1204 = vmatmul.mubr.f32.gmra.mxu0 %v535
        %v1205 = vpop.f32.mrf.mxu0
        %v1206 = vadd.f32 %v464, %v1205
        %v1207 = vpop.f32.mrf.mxu0
        %v1208 = vadd.f32 %v464, %v1207
        %1209 = vmatprep.mubr.f32.mxu0 0.0
        %1210 = vmatmul.mubr.f32.gmra.mxu0 %v538
        %v1211 = vpop.f32.mrf.mxu0
        %v1212 = vadd.f32 %v469, %v1211
        %v1213 = vpop.f32.mrf.mxu0
        %v1214 = vadd.f32 %v469, %v1213
        %1215 = vmatprep.mubr.f32.mxu0 0.0
        %1216 = vmatmul.mubr.f32.gmra.mxu0 %v541
        %v1217 = vpop.f32.mrf.mxu0
        %v1218 = vadd.f32 %v474, %v1217
        %v1219 = vpop.f32.mrf.mxu0
        %v1220 = vadd.f32 %v474, %v1219
        %1221 = vmatprep.mubr.f32.mxu0 0.0
        %1222 = vmatmul.mubr.f32.gmra.mxu0 %v544
        %v1223 = vpop.f32.mrf.mxu0
        %v1224 = vadd.f32 %v479, %v1223
        %v1225 = vpop.f32.mrf.mxu0
        %v1226 = vadd.f32 %v479, %v1225
        %1227 = vmatprep.mubr.f32.mxu0 0.0
        %1228 = vmatmul.mubr.f32.gmra.mxu0 %v547
        %v1229 = vpop.f32.mrf.mxu0
        %v1230 = vadd.f32 %v484, %v1229
        %v1231 = vpop.f32.mrf.mxu0
        %v1232 = vadd.f32 %v484, %v1231
        %1233 = vmatprep.mubr.f32.mxu0 0.0
        %1234 = vmatmul.mubr.f32.gmra.mxu0 %v550
        %v1235 = vpop.f32.mrf.mxu0
        %v1236 = vadd.f32 %v489, %v1235
        %v1237 = vpop.f32.mrf.mxu0
        %v1238 = vadd.f32 %v489, %v1237
        %1239 = vmatprep.mubr.f32.mxu0 0.0
        %1240 = vmatmul.mubr.f32.gmra.mxu0 %v553
        %v1241 = vpop.f32.mrf.mxu0
        %v1242 = vadd.f32 %v494, %v1241
        %v1243 = vpop.f32.mrf.mxu0
        %v1244 = vadd.f32 %v494, %v1243
        %1245 = vmatprep.mubr.f32.mxu0 0.0
        %1246 = vmatmul.mubr.f32.gmra.mxu0 %v556
        %v1247 = vpop.f32.mrf.mxu0
        %v1248 = vadd.f32 %v499, %v1247
        %v1249 = vpop.f32.mrf.mxu0
        %v1250 = vadd.f32 %v499, %v1249
        %1251 = vmatprep.mubr.f32.mxu0 0.0
        %1252 = vmatmul.mubr.f32.gmra.mxu0 %v559
        %v1253 = vpop.f32.mrf.mxu0
        %v1254 = vadd.f32 %v504, %v1253
        %v1255 = vpop.f32.mrf.mxu0
        %v1256 = vadd.f32 %v504, %v1255
        %1257 = vmatprep.mubr.f32.mxu0 0.0
        %1258 = vmatmul.mubr.f32.gmra.mxu0 %v562
        %v1259 = vpop.f32.mrf.mxu0
        %v1260 = vadd.f32 %v509, %v1259
        %v1261 = vpop.f32.mrf.mxu0
        %v1262 = vadd.f32 %v509, %v1261
        %1263 = vmatprep.mubr.f32.mxu0 0.0
        %1264 = vmatmul.mubr.f32.gmra.mxu0 %v565
        %v1265 = vpop.f32.mrf.mxu0
        %v1266 = vadd.f32 %v514, %v1265
        %v1267 = vpop.f32.mrf.mxu0
        %v1268 = vadd.f32 %v514, %v1267
        %1269 = vmatprep.mubr.f32.mxu0 0.0
        %1270 = vmatmul.mubr.f32.gmra.mxu0 %v568
        %v1271 = vpop.f32.mrf.mxu0
        %v1272 = vadd.f32 %v519, %v1271
        %v1273 = vpop.f32.mrf.mxu0
        %v1274 = vadd.f32 %v519, %v1273
        %1275 = vdwg.mxu0
        %1276 = vmatprep.subr.mxu0 0.0
        %1277 = vmatpush1.xpose.msra.mxu0 %v808
        %1278 = vmatprep.subr.mxu0 0.0
        %1279 = vmatpush1.xpose.msra.mxu0 %v805
        %1280 = vmatprep.subr.mxu0 0.0
        %1281 = vmatpush1.xpose.msra.mxu0 %v802
        %1282 = vmatprep.subr.mxu0 0.0
        %1283 = vmatpush1.xpose.msra.mxu0 %v799
        %1284 = vmatprep.subr.mxu0 0.0
        %1285 = vmatpush1.xpose.msra.mxu0 %v796
        %1286 = vmatprep.subr.mxu0 0.0
        %1287 = vmatpush1.xpose.msra.mxu0 %v793
        %1288 = vmatprep.subr.mxu0 0.0
        %1289 = vmatpush1.xpose.msra.mxu0 %v790
        %1290 = vmatprep.subr.mxu0 0.0
        %1291 = vmatpush1.xpose.msra.mxu0 %v787
        %1292 = vmatprep.subr.mxu0 0.0
        %1293 = vmatpush1.xpose.msra.mxu0 %v784
        %1294 = vmatprep.subr.mxu0 0.0
        %1295 = vmatpush1.xpose.msra.mxu0 %v781
        %1296 = vmatprep.subr.mxu0 0.0
        %1297 = vmatpush1.xpose.msra.mxu0 %v778
        %1298 = vmatprep.subr.mxu0 0.0
        %1299 = vmatpush1.xpose.msra.mxu0 %v775
        %1300 = vmatprep.subr.mxu0 0.0
        %1301 = vmatpush1.xpose.msra.mxu0 %v772
        %1302 = vmatprep.subr.mxu0 0.0
        %1303 = vmatpush1.xpose.msra.mxu0 %v769
        %1304 = vmatprep.subr.mxu0 0.0
        %1305 = vmatpush1.xpose.msra.mxu0 %v766
        %1306 = vmatprep.subr.mxu0 0.0
        %1307 = vmatpush1.xpose.msra.mxu0 %v763
        %1308 = vmatprep.subr.mxu0 0.0
        %1309 = vmatpush2.xpose.msra.mxu0 %v856
        %1310 = vmatprep.subr.mxu0 0.0
        %1311 = vmatpush2.xpose.msra.mxu0 %v853
        %1312 = vmatprep.subr.mxu0 0.0
        %1313 = vmatpush2.xpose.msra.mxu0 %v850
        %1314 = vmatprep.subr.mxu0 0.0
        %1315 = vmatpush2.xpose.msra.mxu0 %v847
        %1316 = vmatprep.subr.mxu0 0.0
        %1317 = vmatpush2.xpose.msra.mxu0 %v844
        %1318 = vmatprep.subr.mxu0 0.0
        %1319 = vmatpush2.xpose.msra.mxu0 %v841
        %1320 = vmatprep.subr.mxu0 0.0
        %1321 = vmatpush2.xpose.msra.mxu0 %v838
        %1322 = vmatprep.subr.mxu0 0.0
        %1323 = vmatpush2.xpose.msra.mxu0 %v835
        %1324 = vmatprep.subr.mxu0 0.0
        %1325 = vmatpush2.xpose.msra.mxu0 %v832
        %1326 = vmatprep.subr.mxu0 0.0
        %1327 = vmatpush2.xpose.msra.mxu0 %v829
        %1328 = vmatprep.subr.mxu0 0.0
        %1329 = vmatpush2.xpose.msra.mxu0 %v826
        %1330 = vmatprep.subr.mxu0 0.0
        %1331 = vmatpush2.xpose.msra.mxu0 %v823
        %1332 = vmatprep.subr.mxu0 0.0
        %1333 = vmatpush2.xpose.msra.mxu0 %v820
        %1334 = vmatprep.subr.mxu0 0.0
        %1335 = vmatpush2.xpose.msra.mxu0 %v817
        %1336 = vmatprep.subr.mxu0 0.0
        %1337 = vmatpush2.xpose.msra.mxu0 %v814
        %1338 = vmatprep.subr.mxu0 0.0
        %1339 = vmatpush2.xpose.msra.mxu0 %v811
        %1340 = vmatprep.mubr.f32.mxu0 0.0
        %1341 = vmatmul.mubr.f32.gmra.mxu0 %v523
        %v1342 = vpop.f32.mrf.mxu0
        %v1343 = vadd.f32 %v444, %v1342
        %v1344 = vpop.f32.mrf.mxu0
        %v1345 = vadd.f32 %v444, %v1344
        %1346 = vmatprep.mubr.f32.mxu0 0.0
        %1347 = vmatmul.mubr.f32.gmra.mxu0 %v526
        %v1348 = vpop.f32.mrf.mxu0
        %v1349 = vadd.f32 %v449, %v1348
        %v1350 = vpop.f32.mrf.mxu0
        %v1351 = vadd.f32 %v449, %v1350
        %1352 = vmatprep.mubr.f32.mxu0 0.0
        %1353 = vmatmul.mubr.f32.gmra.mxu0 %v529
        %v1354 = vpop.f32.mrf.mxu0
        %v1355 = vadd.f32 %v454, %v1354
        %v1356 = vpop.f32.mrf.mxu0
        %v1357 = vadd.f32 %v454, %v1356
        %1358 = vmatprep.mubr.f32.mxu0 0.0
        %1359 = vmatmul.mubr.f32.gmra.mxu0 %v532
        %v1360 = vpop.f32.mrf.mxu0
        %v1361 = vadd.f32 %v459, %v1360
        %v1362 = vpop.f32.mrf.mxu0
        %v1363 = vadd.f32 %v459, %v1362
        %1364 = vmatprep.mubr.f32.mxu0 0.0
        %1365 = vmatmul.mubr.f32.gmra.mxu0 %v535
        %v1366 = vpop.f32.mrf.mxu0
        %v1367 = vadd.f32 %v464, %v1366
        %v1368 = vpop.f32.mrf.mxu0
        %v1369 = vadd.f32 %v464, %v1368
        %1370 = vmatprep.mubr.f32.mxu0 0.0
        %1371 = vmatmul.mubr.f32.gmra.mxu0 %v538
        %v1372 = vpop.f32.mrf.mxu0
        %v1373 = vadd.f32 %v469, %v1372
        %v1374 = vpop.f32.mrf.mxu0
        %v1375 = vadd.f32 %v469, %v1374
        %1376 = vmatprep.mubr.f32.mxu0 0.0
        %1377 = vmatmul.mubr.f32.gmra.mxu0 %v541
        %v1378 = vpop.f32.mrf.mxu0
        %v1379 = vadd.f32 %v474, %v1378
        %v1380 = vpop.f32.mrf.mxu0
        %v1381 = vadd.f32 %v474, %v1380
        %1382 = vmatprep.mubr.f32.mxu0 0.0
        %1383 = vmatmul.mubr.f32.gmra.mxu0 %v544
        %v1384 = vpop.f32.mrf.mxu0
        %v1385 = vadd.f32 %v479, %v1384
        %v1386 = vpop.f32.mrf.mxu0
        %v1387 = vadd.f32 %v479, %v1386
        %1388 = vmatprep.mubr.f32.mxu0 0.0
        %1389 = vmatmul.mubr.f32.gmra.mxu0 %v547
        %v1390 = vpop.f32.mrf.mxu0
        %v1391 = vadd.f32 %v484, %v1390
        %v1392 = vpop.f32.mrf.mxu0
        %v1393 = vadd.f32 %v484, %v1392
        %1394 = vmatprep.mubr.f32.mxu0 0.0
        %1395 = vmatmul.mubr.f32.gmra.mxu0 %v550
        %v1396 = vpop.f32.mrf.mxu0
        %v1397 = vadd.f32 %v489, %v1396
        %v1398 = vpop.f32.mrf.mxu0
        %v1399 = vadd.f32 %v489, %v1398
        %1400 = vmatprep.mubr.f32.mxu0 0.0
        %1401 = vmatmul.mubr.f32.gmra.mxu0 %v553
        %v1402 = vpop.f32.mrf.mxu0
        %v1403 = vadd.f32 %v494, %v1402
        %v1404 = vpop.f32.mrf.mxu0
        %v1405 = vadd.f32 %v494, %v1404
        %1406 = vmatprep.mubr.f32.mxu0 0.0
        %1407 = vmatmul.mubr.f32.gmra.mxu0 %v556
        %v1408 = vpop.f32.mrf.mxu0
        %v1409 = vadd.f32 %v499, %v1408
        %v1410 = vpop.f32.mrf.mxu0
        %v1411 = vadd.f32 %v499, %v1410
        %1412 = vmatprep.mubr.f32.mxu0 0.0
        %1413 = vmatmul.mubr.f32.gmra.mxu0 %v559
        %v1414 = vpop.f32.mrf.mxu0
        %v1415 = vadd.f32 %v504, %v1414
        %v1416 = vpop.f32.mrf.mxu0
        %v1417 = vadd.f32 %v504, %v1416
        %1418 = vmatprep.mubr.f32.mxu0 0.0
        %1419 = vmatmul.mubr.f32.gmra.mxu0 %v562
        %v1420 = vpop.f32.mrf.mxu0
        %v1421 = vadd.f32 %v509, %v1420
        %v1422 = vpop.f32.mrf.mxu0
        %v1423 = vadd.f32 %v509, %v1422
        %1424 = vmatprep.mubr.f32.mxu0 0.0
        %1425 = vmatmul.mubr.f32.gmra.mxu0 %v565
        %v1426 = vpop.f32.mrf.mxu0
        %v1427 = vadd.f32 %v514, %v1426
        %v1428 = vpop.f32.mrf.mxu0
        %v1429 = vadd.f32 %v514, %v1428
        %1430 = vmatprep.mubr.f32.mxu0 0.0
        %1431 = vmatmul.mubr.f32.gmra.mxu0 %v568
        %v1432 = vpop.f32.mrf.mxu0
        %v1433 = vadd.f32 %v519, %v1432
        %v1434 = vpop.f32.mrf.mxu0
        %v1435 = vadd.f32 %v519, %v1434
        %1436 = vdwg.mxu0
        %1437 = vmatprep.subr.mxu0 0.0
        %1438 = vmatpush1.xpose.msra.mxu0 %v904
        %1439 = vmatprep.subr.mxu0 0.0
        %1440 = vmatpush1.xpose.msra.mxu0 %v901
        %1441 = vmatprep.subr.mxu0 0.0
        %1442 = vmatpush1.xpose.msra.mxu0 %v898
        %1443 = vmatprep.subr.mxu0 0.0
        %1444 = vmatpush1.xpose.msra.mxu0 %v895
        %1445 = vmatprep.subr.mxu0 0.0
        %1446 = vmatpush1.xpose.msra.mxu0 %v892
        %1447 = vmatprep.subr.mxu0 0.0
        %1448 = vmatpush1.xpose.msra.mxu0 %v889
        %1449 = vmatprep.subr.mxu0 0.0
        %1450 = vmatpush1.xpose.msra.mxu0 %v886
        %1451 = vmatprep.subr.mxu0 0.0
        %1452 = vmatpush1.xpose.msra.mxu0 %v883
        %1453 = vmatprep.subr.mxu0 0.0
        %1454 = vmatpush1.xpose.msra.mxu0 %v880
        %1455 = vmatprep.subr.mxu0 0.0
        %1456 = vmatpush1.xpose.msra.mxu0 %v877
        %1457 = vmatprep.subr.mxu0 0.0
        %1458 = vmatpush1.xpose.msra.mxu0 %v874
        %1459 = vmatprep.subr.mxu0 0.0
        %1460 = vmatpush1.xpose.msra.mxu0 %v871
        %1461 = vmatprep.subr.mxu0 0.0
        %1462 = vmatpush1.xpose.msra.mxu0 %v868
        %1463 = vmatprep.subr.mxu0 0.0
        %1464 = vmatpush1.xpose.msra.mxu0 %v865
        %1465 = vmatprep.subr.mxu0 0.0
        %1466 = vmatpush1.xpose.msra.mxu0 %v862
        %1467 = vmatprep.subr.mxu0 0.0
        %1468 = vmatpush1.xpose.msra.mxu0 %v859
        %1469 = vmatprep.subr.mxu0 0.0
        %1470 = vmatpush2.xpose.msra.mxu0 %v952
        %1471 = vmatprep.subr.mxu0 0.0
        %1472 = vmatpush2.xpose.msra.mxu0 %v949
        %1473 = vmatprep.subr.mxu0 0.0
        %1474 = vmatpush2.xpose.msra.mxu0 %v946
        %1475 = vmatprep.subr.mxu0 0.0
        %1476 = vmatpush2.xpose.msra.mxu0 %v943
        %1477 = vmatprep.subr.mxu0 0.0
        %1478 = vmatpush2.xpose.msra.mxu0 %v940
        %1479 = vmatprep.subr.mxu0 0.0
        %1480 = vmatpush2.xpose.msra.mxu0 %v937
        %1481 = vmatprep.subr.mxu0 0.0
        %1482 = vmatpush2.xpose.msra.mxu0 %v934
        %1483 = vmatprep.subr.mxu0 0.0
        %1484 = vmatpush2.xpose.msra.mxu0 %v931
        %1485 = vmatprep.subr.mxu0 0.0
        %1486 = vmatpush2.xpose.msra.mxu0 %v928
        %1487 = vmatprep.subr.mxu0 0.0
        %1488 = vmatpush2.xpose.msra.mxu0 %v925
        %1489 = vmatprep.subr.mxu0 0.0
        %1490 = vmatpush2.xpose.msra.mxu0 %v922
        %1491 = vmatprep.subr.mxu0 0.0
        %1492 = vmatpush2.xpose.msra.mxu0 %v919
        %1493 = vmatprep.subr.mxu0 0.0
        %1494 = vmatpush2.xpose.msra.mxu0 %v916
        %1495 = vmatprep.subr.mxu0 0.0
        %1496 = vmatpush2.xpose.msra.mxu0 %v913
        %1497 = vmatprep.subr.mxu0 0.0
        %1498 = vmatpush2.xpose.msra.mxu0 %v910
        %1499 = vmatprep.subr.mxu0 0.0
        %1500 = vmatpush2.xpose.msra.mxu0 %v907
        %1501 = vmatprep.mubr.f32.mxu0 0.0
        %1502 = vmatmul.mubr.f32.gmra.mxu0 %v523
        %v1503 = vpop.f32.mrf.mxu0
        %v1504 = vadd.f32 %v444, %v1503
        %v1505 = vpop.f32.mrf.mxu0
        %v1506 = vadd.f32 %v444, %v1505
        %1507 = vmatprep.mubr.f32.mxu0 0.0
        %1508 = vmatmul.mubr.f32.gmra.mxu0 %v526
        %v1509 = vpop.f32.mrf.mxu0
        %v1510 = vadd.f32 %v449, %v1509
        %v1511 = vpop.f32.mrf.mxu0
        %v1512 = vadd.f32 %v449, %v1511
        %1513 = vmatprep.mubr.f32.mxu0 0.0
        %1514 = vmatmul.mubr.f32.gmra.mxu0 %v529
        %v1515 = vpop.f32.mrf.mxu0
        %v1516 = vadd.f32 %v454, %v1515
        %v1517 = vpop.f32.mrf.mxu0
        %v1518 = vadd.f32 %v454, %v1517
        %1519 = vmatprep.mubr.f32.mxu0 0.0
        %1520 = vmatmul.mubr.f32.gmra.mxu0 %v532
        %v1521 = vpop.f32.mrf.mxu0
        %v1522 = vadd.f32 %v459, %v1521
        %v1523 = vpop.f32.mrf.mxu0
        %v1524 = vadd.f32 %v459, %v1523
        %1525 = vmatprep.mubr.f32.mxu0 0.0
        %1526 = vmatmul.mubr.f32.gmra.mxu0 %v535
        %v1527 = vpop.f32.mrf.mxu0
        %v1528 = vadd.f32 %v464, %v1527
        %v1529 = vpop.f32.mrf.mxu0
        %v1530 = vadd.f32 %v464, %v1529
        %1531 = vmatprep.mubr.f32.mxu0 0.0
        %1532 = vmatmul.mubr.f32.gmra.mxu0 %v538
        %v1533 = vpop.f32.mrf.mxu0
        %v1534 = vadd.f32 %v469, %v1533
        %v1535 = vpop.f32.mrf.mxu0
        %v1536 = vadd.f32 %v469, %v1535
        %1537 = vmatprep.mubr.f32.mxu0 0.0
        %1538 = vmatmul.mubr.f32.gmra.mxu0 %v541
        %v1539 = vpop.f32.mrf.mxu0
        %v1540 = vadd.f32 %v474, %v1539
        %v1541 = vpop.f32.mrf.mxu0
        %v1542 = vadd.f32 %v474, %v1541
        %1543 = vmatprep.mubr.f32.mxu0 0.0
        %1544 = vmatmul.mubr.f32.gmra.mxu0 %v544
        %v1545 = vpop.f32.mrf.mxu0
        %v1546 = vadd.f32 %v479, %v1545
        %v1547 = vpop.f32.mrf.mxu0
        %v1548 = vadd.f32 %v479, %v1547
        %1549 = vmatprep.mubr.f32.mxu0 0.0
        %1550 = vmatmul.mubr.f32.gmra.mxu0 %v547
        %v1551 = vpop.f32.mrf.mxu0
        %v1552 = vadd.f32 %v484, %v1551
        %v1553 = vpop.f32.mrf.mxu0
        %v1554 = vadd.f32 %v484, %v1553
        %1555 = vmatprep.mubr.f32.mxu0 0.0
        %1556 = vmatmul.mubr.f32.gmra.mxu0 %v550
        %v1557 = vpop.f32.mrf.mxu0
        %v1558 = vadd.f32 %v489, %v1557
        %v1559 = vpop.f32.mrf.mxu0
        %v1560 = vadd.f32 %v489, %v1559
        %1561 = vmatprep.mubr.f32.mxu0 0.0
        %1562 = vmatmul.mubr.f32.gmra.mxu0 %v553
        %v1563 = vpop.f32.mrf.mxu0
        %v1564 = vadd.f32 %v494, %v1563
        %v1565 = vpop.f32.mrf.mxu0
        %v1566 = vadd.f32 %v494, %v1565
        %1567 = vmatprep.mubr.f32.mxu0 0.0
        %1568 = vmatmul.mubr.f32.gmra.mxu0 %v556
        %v1569 = vpop.f32.mrf.mxu0
        %v1570 = vadd.f32 %v499, %v1569
        %v1571 = vpop.f32.mrf.mxu0
        %v1572 = vadd.f32 %v499, %v1571
        %1573 = vmatprep.mubr.f32.mxu0 0.0
        %1574 = vmatmul.mubr.f32.gmra.mxu0 %v559
        %v1575 = vpop.f32.mrf.mxu0
        %v1576 = vadd.f32 %v504, %v1575
        %v1577 = vpop.f32.mrf.mxu0
        %v1578 = vadd.f32 %v504, %v1577
        %1579 = vmatprep.mubr.f32.mxu0 0.0
        %1580 = vmatmul.mubr.f32.gmra.mxu0 %v562
        %v1581 = vpop.f32.mrf.mxu0
        %v1582 = vadd.f32 %v509, %v1581
        %v1583 = vpop.f32.mrf.mxu0
        %v1584 = vadd.f32 %v509, %v1583
        %1585 = vmatprep.mubr.f32.mxu0 0.0
        %1586 = vmatmul.mubr.f32.gmra.mxu0 %v565
        %v1587 = vpop.f32.mrf.mxu0
        %v1588 = vadd.f32 %v514, %v1587
        %v1589 = vpop.f32.mrf.mxu0
        %v1590 = vadd.f32 %v514, %v1589
        %1591 = vmatprep.mubr.f32.mxu0 0.0
        %1592 = vmatmul.mubr.f32.gmra.mxu0 %v568
        %v1593 = vpop.f32.mrf.mxu0
        %v1594 = vadd.f32 %v519, %v1593
        %v1595 = vpop.f32.mrf.mxu0
        %v1596 = vadd.f32 %v519, %v1595
        %1597 = vdwg.mxu0
        %v1598 = vmax.f32 %v1021, 0.0
        %v1599 = vmax.f32 %v1023, 0.0
        %v1600 = vmax.f32 %v1182, 0.0
        %v1601 = vmax.f32 %v1184, 0.0
        %v1602 = vmax.f32 %v1343, 0.0
        %v1603 = vmax.f32 %v1345, 0.0
        %v1604 = vmax.f32 %v1504, 0.0
        %v1605 = vmax.f32 %v1506, 0.0
        %v1606 = vmax.f32 %v1027, 0.0
        %v1607 = vmax.f32 %v1029, 0.0
        %v1608 = vmax.f32 %v1188, 0.0
        %v1609 = vmax.f32 %v1190, 0.0
        %v1610 = vmax.f32 %v1349, 0.0
        %v1611 = vmax.f32 %v1351, 0.0
        %v1612 = vmax.f32 %v1510, 0.0
        %v1613 = vmax.f32 %v1512, 0.0
        %v1614 = vmax.f32 %v1033, 0.0
        %v1615 = vmax.f32 %v1035, 0.0
        %v1616 = vmax.f32 %v1194, 0.0
        %v1617 = vmax.f32 %v1196, 0.0
        %v1618 = vmax.f32 %v1355, 0.0
        %v1619 = vmax.f32 %v1357, 0.0
        %v1620 = vmax.f32 %v1516, 0.0
        %v1621 = vmax.f32 %v1518, 0.0
        %v1622 = vmax.f32 %v1039, 0.0
        %v1623 = vmax.f32 %v1041, 0.0
        %v1624 = vmax.f32 %v1200, 0.0
        %v1625 = vmax.f32 %v1202, 0.0
        %v1626 = vmax.f32 %v1361, 0.0
        %v1627 = vmax.f32 %v1363, 0.0
        %v1628 = vmax.f32 %v1522, 0.0
        %v1629 = vmax.f32 %v1524, 0.0
        %v1630 = vmax.f32 %v1045, 0.0
        %v1631 = vmax.f32 %v1047, 0.0
        %v1632 = vmax.f32 %v1206, 0.0
        %v1633 = vmax.f32 %v1208, 0.0
        %v1634 = vmax.f32 %v1367, 0.0
        %v1635 = vmax.f32 %v1369, 0.0
        %v1636 = vmax.f32 %v1528, 0.0
        %v1637 = vmax.f32 %v1530, 0.0
        %v1638 = vmax.f32 %v1051, 0.0
        %v1639 = vmax.f32 %v1053, 0.0
        %v1640 = vmax.f32 %v1212, 0.0
        %v1641 = vmax.f32 %v1214, 0.0
        %v1642 = vmax.f32 %v1373, 0.0
        %v1643 = vmax.f32 %v1375, 0.0
        %v1644 = vmax.f32 %v1534, 0.0
        %v1645 = vmax.f32 %v1536, 0.0
        %v1646 = vmax.f32 %v1057, 0.0
        %v1647 = vmax.f32 %v1059, 0.0
        %v1648 = vmax.f32 %v1218, 0.0
        %v1649 = vmax.f32 %v1220, 0.0
        %v1650 = vmax.f32 %v1379, 0.0
        %v1651 = vmax.f32 %v1381, 0.0
        %v1652 = vmax.f32 %v1540, 0.0
        %v1653 = vmax.f32 %v1542, 0.0
        %v1654 = vmax.f32 %v1063, 0.0
        %v1655 = vmax.f32 %v1065, 0.0
        %v1656 = vmax.f32 %v1224, 0.0
        %v1657 = vmax.f32 %v1226, 0.0
        %v1658 = vmax.f32 %v1385, 0.0
        %v1659 = vmax.f32 %v1387, 0.0
        %v1660 = vmax.f32 %v1546, 0.0
        %v1661 = vmax.f32 %v1548, 0.0
        %v1662 = vmax.f32 %v1069, 0.0
        %v1663 = vmax.f32 %v1071, 0.0
        %v1664 = vmax.f32 %v1230, 0.0
        %v1665 = vmax.f32 %v1232, 0.0
        %v1666 = vmax.f32 %v1391, 0.0
        %v1667 = vmax.f32 %v1393, 0.0
        %v1668 = vmax.f32 %v1552, 0.0
        %v1669 = vmax.f32 %v1554, 0.0
        %v1670 = vmax.f32 %v1075, 0.0
        %v1671 = vmax.f32 %v1077, 0.0
        %v1672 = vmax.f32 %v1236, 0.0
        %v1673 = vmax.f32 %v1238, 0.0
        %v1674 = vmax.f32 %v1397, 0.0
        %v1675 = vmax.f32 %v1399, 0.0
        %v1676 = vmax.f32 %v1558, 0.0
        %v1677 = vmax.f32 %v1560, 0.0
        %v1678 = vmax.f32 %v1081, 0.0
        %v1679 = vmax.f32 %v1083, 0.0
        %v1680 = vmax.f32 %v1242, 0.0
        %v1681 = vmax.f32 %v1244, 0.0
        %v1682 = vmax.f32 %v1403, 0.0
        %v1683 = vmax.f32 %v1405, 0.0
        %v1684 = vmax.f32 %v1564, 0.0
        %v1685 = vmax.f32 %v1566, 0.0
        %v1686 = vmax.f32 %v1087, 0.0
        %v1687 = vmax.f32 %v1089, 0.0
        %v1688 = vmax.f32 %v1248, 0.0
        %v1689 = vmax.f32 %v1250, 0.0
        %v1690 = vmax.f32 %v1409, 0.0
        %v1691 = vmax.f32 %v1411, 0.0
        %v1692 = vmax.f32 %v1570, 0.0
        %v1693 = vmax.f32 %v1572, 0.0
        %v1694 = vmax.f32 %v1093, 0.0
        %v1695 = vmax.f32 %v1095, 0.0
        %v1696 = vmax.f32 %v1254, 0.0
        %v1697 = vmax.f32 %v1256, 0.0
        %v1698 = vmax.f32 %v1415, 0.0
        %v1699 = vmax.f32 %v1417, 0.0
        %v1700 = vmax.f32 %v1576, 0.0
        %v1701 = vmax.f32 %v1578, 0.0
        %v1702 = vmax.f32 %v1099, 0.0
        %v1703 = vmax.f32 %v1101, 0.0
        %v1704 = vmax.f32 %v1260, 0.0
        %v1705 = vmax.f32 %v1262, 0.0
        %v1706 = vmax.f32 %v1421, 0.0
        %v1707 = vmax.f32 %v1423, 0.0
        %v1708 = vmax.f32 %v1582, 0.0
        %v1709 = vmax.f32 %v1584, 0.0
        %v1710 = vmax.f32 %v1105, 0.0
        %v1711 = vmax.f32 %v1107, 0.0
        %v1712 = vmax.f32 %v1266, 0.0
        %v1713 = vmax.f32 %v1268, 0.0
        %v1714 = vmax.f32 %v1427, 0.0
        %v1715 = vmax.f32 %v1429, 0.0
        %v1716 = vmax.f32 %v1588, 0.0
        %v1717 = vmax.f32 %v1590, 0.0
        %v1718 = vmax.f32 %v1111, 0.0
        %v1719 = vmax.f32 %v1113, 0.0
        %v1720 = vmax.f32 %v1272, 0.0
        %v1721 = vmax.f32 %v1274, 0.0
        %v1722 = vmax.f32 %v1433, 0.0
        %v1723 = vmax.f32 %v1435, 0.0
        %v1724 = vmax.f32 %v1594, 0.0
        %v1725 = vmax.f32 %v1596, 0.0
        %v1726 = vld [vmem:[%s3] sm:$0xff]
        %v1727 = vld [vmem:[%s3 + $0x8] sm:$0xff]
        %v1728 = vld [vmem:[%s3 + $0x10] sm:$0xff]
        %v1729 = vld [vmem:[%s3 + $0x18] sm:$0xff]
        %v1730 = vld [vmem:[%s3 + $0x20] sm:$0xff]
        %v1731 = vld [vmem:[%s3 + $0x28] sm:$0xff]
        %v1732 = vld [vmem:[%s3 + $0x30] sm:$0xff]
        %v1733 = vld [vmem:[%s3 + $0x38] sm:$0xff]
        %v1734 = vld [vmem:[%s4] sm:$0xff]
        %v1735 = vld [vmem:[%s4 + $0x8] sm:$0xff]
        %v1736 = vld [vmem:[%s4 + $0x10] sm:$0xff]
        %v1737 = vld [vmem:[%s4 + $0x18] sm:$0xff]
        %v1738 = vld [vmem:[%s4 + $0x20] sm:$0xff]
        %v1739 = vld [vmem:[%s4 + $0x28] sm:$0xff]
        %v1740 = vld [vmem:[%s4 + $0x30] sm:$0xff]
        %v1741 = vld [vmem:[%s4 + $0x38] sm:$0xff]
        %1743 = vset.pattern.permute.xlu0 0
        %1744 = vperm.xlu0 %1743, %v1734
        %v1745 = vpop.permute.xlu0 %1744
        %1748 = vset.pattern.permute.xlu0 0
        %1749 = vperm.xlu0 %1748, %v1735
        %v1750 = vpop.permute.xlu0 %1749
        %1753 = vset.pattern.permute.xlu0 0
        %1754 = vperm.xlu0 %1753, %v1736
        %v1755 = vpop.permute.xlu0 %1754
        %1758 = vset.pattern.permute.xlu0 0
        %1759 = vperm.xlu0 %1758, %v1737
        %v1760 = vpop.permute.xlu0 %1759
        %1763 = vset.pattern.permute.xlu0 0
        %1764 = vperm.xlu0 %1763, %v1738
        %v1765 = vpop.permute.xlu0 %1764
        %1768 = vset.pattern.permute.xlu0 0
        %1769 = vperm.xlu0 %1768, %v1739
        %v1770 = vpop.permute.xlu0 %1769
        %1773 = vset.pattern.permute.xlu0 0
        %1774 = vperm.xlu0 %1773, %v1740
        %v1775 = vpop.permute.xlu0 %1774
        %1778 = vset.pattern.permute.xlu0 0
        %1779 = vperm.xlu0 %1778, %v1741
        %v1780 = vpop.permute.xlu0 %1779
        %1782 = vmatprep.subr.mxu0 %v1719
        %1783 = vmatpush1.msra.mxu0 %v1718
        %1784 = vmatprep.subr.mxu0 %v1711
        %1785 = vmatpush1.msra.mxu0 %v1710
        %1786 = vmatprep.subr.mxu0 %v1703
        %1787 = vmatpush1.msra.mxu0 %v1702
        %1788 = vmatprep.subr.mxu0 %v1695
        %1789 = vmatpush1.msra.mxu0 %v1694
        %1790 = vmatprep.subr.mxu0 %v1687
        %1791 = vmatpush1.msra.mxu0 %v1686
        %1792 = vmatprep.subr.mxu0 %v1679
        %1793 = vmatpush1.msra.mxu0 %v1678
        %1794 = vmatprep.subr.mxu0 %v1671
        %1795 = vmatpush1.msra.mxu0 %v1670
        %1796 = vmatprep.subr.mxu0 %v1663
        %1797 = vmatpush1.msra.mxu0 %v1662
        %1798 = vmatprep.subr.mxu0 %v1655
        %1799 = vmatpush1.msra.mxu0 %v1654
        %1800 = vmatprep.subr.mxu0 %v1647
        %1801 = vmatpush1.msra.mxu0 %v1646
        %1802 = vmatprep.subr.mxu0 %v1639
        %1803 = vmatpush1.msra.mxu0 %v1638
        %1804 = vmatprep.subr.mxu0 %v1631
        %1805 = vmatpush1.msra.mxu0 %v1630
        %1806 = vmatprep.subr.mxu0 %v1623
        %1807 = vmatpush1.msra.mxu0 %v1622
        %1808 = vmatprep.subr.mxu0 %v1615
        %1809 = vmatpush1.msra.mxu0 %v1614
        %1810 = vmatprep.subr.mxu0 %v1607
        %1811 = vmatpush1.msra.mxu0 %v1606
        %1812 = vmatprep.subr.mxu0 %v1599
        %1813 = vmatpush1.msra.mxu0 %v1598
        %1814 = vmatprep.subr.mxu0 0.0
        %1815 = vmatpush2.msra.mxu0 0.0
        %1816 = vmatprep.subr.mxu0 0.0
        %1817 = vmatpush2.msra.mxu0 0.0
        %1818 = vmatprep.subr.mxu0 0.0
        %1819 = vmatpush2.msra.mxu0 0.0
        %1820 = vmatprep.subr.mxu0 0.0
        %1821 = vmatpush2.msra.mxu0 0.0
        %1822 = vmatprep.subr.mxu0 0.0
        %1823 = vmatpush2.msra.mxu0 0.0
        %1824 = vmatprep.subr.mxu0 0.0
        %1825 = vmatpush2.msra.mxu0 0.0
        %1826 = vmatprep.subr.mxu0 0.0
        %1827 = vmatpush2.msra.mxu0 0.0
        %1828 = vmatprep.subr.mxu0 0.0
        %1829 = vmatpush2.msra.mxu0 0.0
        %1830 = vmatprep.subr.mxu0 0.0
        %1831 = vmatpush2.msra.mxu0 0.0
        %1832 = vmatprep.subr.mxu0 0.0
        %1833 = vmatpush2.msra.mxu0 0.0
        %1834 = vmatprep.subr.mxu0 0.0
        %1835 = vmatpush2.msra.mxu0 0.0
        %1836 = vmatprep.subr.mxu0 0.0
        %1837 = vmatpush2.msra.mxu0 0.0
        %1838 = vmatprep.subr.mxu0 0.0
        %1839 = vmatpush2.msra.mxu0 0.0
        %1840 = vmatprep.subr.mxu0 0.0
        %1841 = vmatpush2.msra.mxu0 0.0
        %1842 = vmatprep.subr.mxu0 0.0
        %1843 = vmatpush2.msra.mxu0 0.0
        %1844 = vmatprep.subr.mxu0 0.0
        %1845 = vmatpush2.msra.mxu0 0.0
        %1846 = vmatprep.mubr.f32.mxu0 0.0
        %1847 = vmatmul.mubr.f32.gmra.mxu0 %v1726
        %v1848 = vpop.f32.mrf.mxu0
        %v1849 = vadd.f32 %v1745, %v1848
        %v1850 = vpop.f32.mrf.mxu0
        %v1851 = vadd.f32 %v1745, %v1850
        %1852 = vmatprep.mubr.f32.mxu0 0.0
        %1853 = vmatmul.mubr.f32.gmra.mxu0 %v1727
        %v1854 = vpop.f32.mrf.mxu0
        %v1855 = vadd.f32 %v1750, %v1854
        %v1856 = vpop.f32.mrf.mxu0
        %v1857 = vadd.f32 %v1750, %v1856
        %1858 = vmatprep.mubr.f32.mxu0 0.0
        %1859 = vmatmul.mubr.f32.gmra.mxu0 %v1728
        %v1860 = vpop.f32.mrf.mxu0
        %v1861 = vadd.f32 %v1755, %v1860
        %v1862 = vpop.f32.mrf.mxu0
        %v1863 = vadd.f32 %v1755, %v1862
        %1864 = vmatprep.mubr.f32.mxu0 0.0
        %1865 = vmatmul.mubr.f32.gmra.mxu0 %v1729
        %v1866 = vpop.f32.mrf.mxu0
        %v1867 = vadd.f32 %v1760, %v1866
        %v1868 = vpop.f32.mrf.mxu0
        %v1869 = vadd.f32 %v1760, %v1868
        %1870 = vmatprep.mubr.f32.mxu0 0.0
        %1871 = vmatmul.mubr.f32.gmra.mxu0 %v1730
        %v1872 = vpop.f32.mrf.mxu0
        %v1873 = vadd.f32 %v1765, %v1872
        %v1874 = vpop.f32.mrf.mxu0
        %v1875 = vadd.f32 %v1765, %v1874
        %1876 = vmatprep.mubr.f32.mxu0 0.0
        %1877 = vmatmul.mubr.f32.gmra.mxu0 %v1731
        %v1878 = vpop.f32.mrf.mxu0
        %v1879 = vadd.f32 %v1770, %v1878
        %v1880 = vpop.f32.mrf.mxu0
        %v1881 = vadd.f32 %v1770, %v1880
        %1882 = vmatprep.mubr.f32.mxu0 0.0
        %1883 = vmatmul.mubr.f32.gmra.mxu0 %v1732
        %v1884 = vpop.f32.mrf.mxu0
        %v1885 = vadd.f32 %v1775, %v1884
        %v1886 = vpop.f32.mrf.mxu0
        %v1887 = vadd.f32 %v1775, %v1886
        %1888 = vmatprep.mubr.f32.mxu0 0.0
        %1889 = vmatmul.mubr.f32.gmra.mxu0 %v1733
        %v1890 = vpop.f32.mrf.mxu0
        %v1891 = vadd.f32 %v1780, %v1890
        %v1892 = vpop.f32.mrf.mxu0
        %v1893 = vadd.f32 %v1780, %v1892
        %1894 = vdwg.mxu0
        %1895 = vmatprep.subr.mxu0 %v1721
        %1896 = vmatpush1.msra.mxu0 %v1720
        %1897 = vmatprep.subr.mxu0 %v1713
        %1898 = vmatpush1.msra.mxu0 %v1712
        %1899 = vmatprep.subr.mxu0 %v1705
        %1900 = vmatpush1.msra.mxu0 %v1704
        %1901 = vmatprep.subr.mxu0 %v1697
        %1902 = vmatpush1.msra.mxu0 %v1696
        %1903 = vmatprep.subr.mxu0 %v1689
        %1904 = vmatpush1.msra.mxu0 %v1688
        %1905 = vmatprep.subr.mxu0 %v1681
        %1906 = vmatpush1.msra.mxu0 %v1680
        %1907 = vmatprep.subr.mxu0 %v1673
        %1908 = vmatpush1.msra.mxu0 %v1672
        %1909 = vmatprep.subr.mxu0 %v1665
        %1910 = vmatpush1.msra.mxu0 %v1664
        %1911 = vmatprep.subr.mxu0 %v1657
        %1912 = vmatpush1.msra.mxu0 %v1656
        %1913 = vmatprep.subr.mxu0 %v1649
        %1914 = vmatpush1.msra.mxu0 %v1648
        %1915 = vmatprep.subr.mxu0 %v1641
        %1916 = vmatpush1.msra.mxu0 %v1640
        %1917 = vmatprep.subr.mxu0 %v1633
        %1918 = vmatpush1.msra.mxu0 %v1632
        %1919 = vmatprep.subr.mxu0 %v1625
        %1920 = vmatpush1.msra.mxu0 %v1624
        %1921 = vmatprep.subr.mxu0 %v1617
        %1922 = vmatpush1.msra.mxu0 %v1616
        %1923 = vmatprep.subr.mxu0 %v1609
        %1924 = vmatpush1.msra.mxu0 %v1608
        %1925 = vmatprep.subr.mxu0 %v1601
        %1926 = vmatpush1.msra.mxu0 %v1600
        %1927 = vmatprep.subr.mxu0 0.0
        %1928 = vmatpush2.msra.mxu0 0.0
        %1929 = vmatprep.subr.mxu0 0.0
        %1930 = vmatpush2.msra.mxu0 0.0
        %1931 = vmatprep.subr.mxu0 0.0
        %1932 = vmatpush2.msra.mxu0 0.0
        %1933 = vmatprep.subr.mxu0 0.0
        %1934 = vmatpush2.msra.mxu0 0.0
        %1935 = vmatprep.subr.mxu0 0.0
        %1936 = vmatpush2.msra.mxu0 0.0
        %1937 = vmatprep.subr.mxu0 0.0
        %1938 = vmatpush2.msra.mxu0 0.0
        %1939 = vmatprep.subr.mxu0 0.0
        %1940 = vmatpush2.msra.mxu0 0.0
        %1941 = vmatprep.subr.mxu0 0.0
        %1942 = vmatpush2.msra.mxu0 0.0
        %1943 = vmatprep.subr.mxu0 0.0
        %1944 = vmatpush2.msra.mxu0 0.0
        %1945 = vmatprep.subr.mxu0 0.0
        %1946 = vmatpush2.msra.mxu0 0.0
        %1947 = vmatprep.subr.mxu0 0.0
        %1948 = vmatpush2.msra.mxu0 0.0
        %1949 = vmatprep.subr.mxu0 0.0
        %1950 = vmatpush2.msra.mxu0 0.0
        %1951 = vmatprep.subr.mxu0 0.0
        %1952 = vmatpush2.msra.mxu0 0.0
        %1953 = vmatprep.subr.mxu0 0.0
        %1954 = vmatpush2.msra.mxu0 0.0
        %1955 = vmatprep.subr.mxu0 0.0
        %1956 = vmatpush2.msra.mxu0 0.0
        %1957 = vmatprep.subr.mxu0 0.0
        %1958 = vmatpush2.msra.mxu0 0.0
        %1959 = vmatprep.mubr.f32.mxu0 0.0
        %1960 = vmatmul.mubr.f32.gmra.mxu0 %v1726
        %v1961 = vpop.f32.mrf.mxu0
        %v1962 = vadd.f32 %v1745, %v1961
        %v1963 = vpop.f32.mrf.mxu0
        %v1964 = vadd.f32 %v1745, %v1963
        %1965 = vmatprep.mubr.f32.mxu0 0.0
        %1966 = vmatmul.mubr.f32.gmra.mxu0 %v1727
        %v1967 = vpop.f32.mrf.mxu0
        %v1968 = vadd.f32 %v1750, %v1967
        %v1969 = vpop.f32.mrf.mxu0
        %v1970 = vadd.f32 %v1750, %v1969
        %1971 = vmatprep.mubr.f32.mxu0 0.0
        %1972 = vmatmul.mubr.f32.gmra.mxu0 %v1728
        %v1973 = vpop.f32.mrf.mxu0
        %v1974 = vadd.f32 %v1755, %v1973
        %v1975 = vpop.f32.mrf.mxu0
        %v1976 = vadd.f32 %v1755, %v1975
        %1977 = vmatprep.mubr.f32.mxu0 0.0
        %1978 = vmatmul.mubr.f32.gmra.mxu0 %v1729
        %v1979 = vpop.f32.mrf.mxu0
        %v1980 = vadd.f32 %v1760, %v1979
        %v1981 = vpop.f32.mrf.mxu0
        %v1982 = vadd.f32 %v1760, %v1981
        %1983 = vmatprep.mubr.f32.mxu0 0.0
        %1984 = vmatmul.mubr.f32.gmra.mxu0 %v1730
        %v1985 = vpop.f32.mrf.mxu0
        %v1986 = vadd.f32 %v1765, %v1985
        %v1987 = vpop.f32.mrf.mxu0
        %v1988 = vadd.f32 %v1765, %v1987
        %1989 = vmatprep.mubr.f32.mxu0 0.0
        %1990 = vmatmul.mubr.f32.gmra.mxu0 %v1731
        %v1991 = vpop.f32.mrf.mxu0
        %v1992 = vadd.f32 %v1770, %v1991
        %v1993 = vpop.f32.mrf.mxu0
        %v1994 = vadd.f32 %v1770, %v1993
        %1995 = vmatprep.mubr.f32.mxu0 0.0
        %1996 = vmatmul.mubr.f32.gmra.mxu0 %v1732
        %v1997 = vpop.f32.mrf.mxu0
        %v1998 = vadd.f32 %v1775, %v1997
        %v1999 = vpop.f32.mrf.mxu0
        %v2000 = vadd.f32 %v1775, %v1999
        %2001 = vmatprep.mubr.f32.mxu0 0.0
        %2002 = vmatmul.mubr.f32.gmra.mxu0 %v1733
        %v2003 = vpop.f32.mrf.mxu0
        %v2004 = vadd.f32 %v1780, %v2003
        %v2005 = vpop.f32.mrf.mxu0
        %v2006 = vadd.f32 %v1780, %v2005
        %2007 = vdwg.mxu0
        %2008 = vmatprep.subr.mxu0 %v1723
        %2009 = vmatpush1.msra.mxu0 %v1722
        %2010 = vmatprep.subr.mxu0 %v1715
        %2011 = vmatpush1.msra.mxu0 %v1714
        %2012 = vmatprep.subr.mxu0 %v1707
        %2013 = vmatpush1.msra.mxu0 %v1706
        %2014 = vmatprep.subr.mxu0 %v1699
        %2015 = vmatpush1.msra.mxu0 %v1698
        %2016 = vmatprep.subr.mxu0 %v1691
        %2017 = vmatpush1.msra.mxu0 %v1690
        %2018 = vmatprep.subr.mxu0 %v1683
        %2019 = vmatpush1.msra.mxu0 %v1682
        %2020 = vmatprep.subr.mxu0 %v1675
        %2021 = vmatpush1.msra.mxu0 %v1674
        %2022 = vmatprep.subr.mxu0 %v1667
        %2023 = vmatpush1.msra.mxu0 %v1666
        %2024 = vmatprep.subr.mxu0 %v1659
        %2025 = vmatpush1.msra.mxu0 %v1658
        %2026 = vmatprep.subr.mxu0 %v1651
        %2027 = vmatpush1.msra.mxu0 %v1650
        %2028 = vmatprep.subr.mxu0 %v1643
        %2029 = vmatpush1.msra.mxu0 %v1642
        %2030 = vmatprep.subr.mxu0 %v1635
        %2031 = vmatpush1.msra.mxu0 %v1634
        %2032 = vmatprep.subr.mxu0 %v1627
        %2033 = vmatpush1.msra.mxu0 %v1626
        %2034 = vmatprep.subr.mxu0 %v1619
        %2035 = vmatpush1.msra.mxu0 %v1618
        %2036 = vmatprep.subr.mxu0 %v1611
        %2037 = vmatpush1.msra.mxu0 %v1610
        %2038 = vmatprep.subr.mxu0 %v1603
        %2039 = vmatpush1.msra.mxu0 %v1602
        %2040 = vmatprep.subr.mxu0 0.0
        %2041 = vmatpush2.msra.mxu0 0.0
        %2042 = vmatprep.subr.mxu0 0.0
        %2043 = vmatpush2.msra.mxu0 0.0
        %2044 = vmatprep.subr.mxu0 0.0
        %2045 = vmatpush2.msra.mxu0 0.0
        %2046 = vmatprep.subr.mxu0 0.0
        %2047 = vmatpush2.msra.mxu0 0.0
        %2048 = vmatprep.subr.mxu0 0.0
        %2049 = vmatpush2.msra.mxu0 0.0
        %2050 = vmatprep.subr.mxu0 0.0
        %2051 = vmatpush2.msra.mxu0 0.0
        %2052 = vmatprep.subr.mxu0 0.0
        %2053 = vmatpush2.msra.mxu0 0.0
        %2054 = vmatprep.subr.mxu0 0.0
        %2055 = vmatpush2.msra.mxu0 0.0
        %2056 = vmatprep.subr.mxu0 0.0
        %2057 = vmatpush2.msra.mxu0 0.0
        %2058 = vmatprep.subr.mxu0 0.0
        %2059 = vmatpush2.msra.mxu0 0.0
        %2060 = vmatprep.subr.mxu0 0.0
        %2061 = vmatpush2.msra.mxu0 0.0
        %2062 = vmatprep.subr.mxu0 0.0
        %2063 = vmatpush2.msra.mxu0 0.0
        %2064 = vmatprep.subr.mxu0 0.0
        %2065 = vmatpush2.msra.mxu0 0.0
        %2066 = vmatprep.subr.mxu0 0.0
        %2067 = vmatpush2.msra.mxu0 0.0
        %2068 = vmatprep.subr.mxu0 0.0
        %2069 = vmatpush2.msra.mxu0 0.0
        %2070 = vmatprep.subr.mxu0 0.0
        %2071 = vmatpush2.msra.mxu0 0.0
        %2072 = vmatprep.mubr.f32.mxu0 0.0
        %2073 = vmatmul.mubr.f32.gmra.mxu0 %v1726
        %v2074 = vpop.f32.mrf.mxu0
        %v2075 = vadd.f32 %v1745, %v2074
        %v2076 = vpop.f32.mrf.mxu0
        %v2077 = vadd.f32 %v1745, %v2076
        %2078 = vmatprep.mubr.f32.mxu0 0.0
        %2079 = vmatmul.mubr.f32.gmra.mxu0 %v1727
        %v2080 = vpop.f32.mrf.mxu0
        %v2081 = vadd.f32 %v1750, %v2080
        %v2082 = vpop.f32.mrf.mxu0
        %v2083 = vadd.f32 %v1750, %v2082
        %2084 = vmatprep.mubr.f32.mxu0 0.0
        %2085 = vmatmul.mubr.f32.gmra.mxu0 %v1728
        %v2086 = vpop.f32.mrf.mxu0
        %v2087 = vadd.f32 %v1755, %v2086
        %v2088 = vpop.f32.mrf.mxu0
        %v2089 = vadd.f32 %v1755, %v2088
        %2090 = vmatprep.mubr.f32.mxu0 0.0
        %2091 = vmatmul.mubr.f32.gmra.mxu0 %v1729
        %v2092 = vpop.f32.mrf.mxu0
        %v2093 = vadd.f32 %v1760, %v2092
        %v2094 = vpop.f32.mrf.mxu0
        %v2095 = vadd.f32 %v1760, %v2094
        %2096 = vmatprep.mubr.f32.mxu0 0.0
        %2097 = vmatmul.mubr.f32.gmra.mxu0 %v1730
        %v2098 = vpop.f32.mrf.mxu0
        %v2099 = vadd.f32 %v1765, %v2098
        %v2100 = vpop.f32.mrf.mxu0
        %v2101 = vadd.f32 %v1765, %v2100
        %2102 = vmatprep.mubr.f32.mxu0 0.0
        %2103 = vmatmul.mubr.f32.gmra.mxu0 %v1731
        %v2104 = vpop.f32.mrf.mxu0
        %v2105 = vadd.f32 %v1770, %v2104
        %v2106 = vpop.f32.mrf.mxu0
        %v2107 = vadd.f32 %v1770, %v2106
        %2108 = vmatprep.mubr.f32.mxu0 0.0
        %2109 = vmatmul.mubr.f32.gmra.mxu0 %v1732
        %v2110 = vpop.f32.mrf.mxu0
        %v2111 = vadd.f32 %v1775, %v2110
        %v2112 = vpop.f32.mrf.mxu0
        %v2113 = vadd.f32 %v1775, %v2112
        %2114 = vmatprep.mubr.f32.mxu0 0.0
        %2115 = vmatmul.mubr.f32.gmra.mxu0 %v1733
        %v2116 = vpop.f32.mrf.mxu0
        %v2117 = vadd.f32 %v1780, %v2116
        %v2118 = vpop.f32.mrf.mxu0
        %v2119 = vadd.f32 %v1780, %v2118
        %2120 = vdwg.mxu0
        %2121 = vmatprep.subr.mxu0 %v1725
        %2122 = vmatpush1.msra.mxu0 %v1724
        %2123 = vmatprep.subr.mxu0 %v1717
        %2124 = vmatpush1.msra.mxu0 %v1716
        %2125 = vmatprep.subr.mxu0 %v1709
        %2126 = vmatpush1.msra.mxu0 %v1708
        %2127 = vmatprep.subr.mxu0 %v1701
        %2128 = vmatpush1.msra.mxu0 %v1700
        %2129 = vmatprep.subr.mxu0 %v1693
        %2130 = vmatpush1.msra.mxu0 %v1692
        %2131 = vmatprep.subr.mxu0 %v1685
        %2132 = vmatpush1.msra.mxu0 %v1684
        %2133 = vmatprep.subr.mxu0 %v1677
        %2134 = vmatpush1.msra.mxu0 %v1676
        %2135 = vmatprep.subr.mxu0 %v1669
        %2136 = vmatpush1.msra.mxu0 %v1668
        %2137 = vmatprep.subr.mxu0 %v1661
        %2138 = vmatpush1.msra.mxu0 %v1660
        %2139 = vmatprep.subr.mxu0 %v1653
        %2140 = vmatpush1.msra.mxu0 %v1652
        %2141 = vmatprep.subr.mxu0 %v1645
        %2142 = vmatpush1.msra.mxu0 %v1644
        %2143 = vmatprep.subr.mxu0 %v1637
        %2144 = vmatpush1.msra.mxu0 %v1636
        %2145 = vmatprep.subr.mxu0 %v1629
        %2146 = vmatpush1.msra.mxu0 %v1628
        %2147 = vmatprep.subr.mxu0 %v1621
        %2148 = vmatpush1.msra.mxu0 %v1620
        %2149 = vmatprep.subr.mxu0 %v1613
        %2150 = vmatpush1.msra.mxu0 %v1612
        %2151 = vmatprep.subr.mxu0 %v1605
        %2152 = vmatpush1.msra.mxu0 %v1604
        %2153 = vmatprep.subr.mxu0 0.0
        %2154 = vmatpush2.msra.mxu0 0.0
        %2155 = vmatprep.subr.mxu0 0.0
        %2156 = vmatpush2.msra.mxu0 0.0
        %2157 = vmatprep.subr.mxu0 0.0
        %2158 = vmatpush2.msra.mxu0 0.0
        %2159 = vmatprep.subr.mxu0 0.0
        %2160 = vmatpush2.msra.mxu0 0.0
        %2161 = vmatprep.subr.mxu0 0.0
        %2162 = vmatpush2.msra.mxu0 0.0
        %2163 = vmatprep.subr.mxu0 0.0
        %2164 = vmatpush2.msra.mxu0 0.0
        %2165 = vmatprep.subr.mxu0 0.0
        %2166 = vmatpush2.msra.mxu0 0.0
        %2167 = vmatprep.subr.mxu0 0.0
        %2168 = vmatpush2.msra.mxu0 0.0
        %2169 = vmatprep.subr.mxu0 0.0
        %2170 = vmatpush2.msra.mxu0 0.0
        %2171 = vmatprep.subr.mxu0 0.0
        %2172 = vmatpush2.msra.mxu0 0.0
        %2173 = vmatprep.subr.mxu0 0.0
        %2174 = vmatpush2.msra.mxu0 0.0
        %2175 = vmatprep.subr.mxu0 0.0
        %2176 = vmatpush2.msra.mxu0 0.0
        %2177 = vmatprep.subr.mxu0 0.0
        %2178 = vmatpush2.msra.mxu0 0.0
        %2179 = vmatprep.subr.mxu0 0.0
        %2180 = vmatpush2.msra.mxu0 0.0
        %2181 = vmatprep.subr.mxu0 0.0
        %2182 = vmatpush2.msra.mxu0 0.0
        %2183 = vmatprep.subr.mxu0 0.0
        %2184 = vmatpush2.msra.mxu0 0.0
        %2185 = vmatprep.mubr.f32.mxu0 0.0
        %2186 = vmatmul.mubr.f32.gmra.mxu0 %v1726
        %v2187 = vpop.f32.mrf.mxu0
        %v2188 = vadd.f32 %v1745, %v2187
        %v2189 = vpop.f32.mrf.mxu0
        %v2190 = vadd.f32 %v1745, %v2189
        %2191 = vmatprep.mubr.f32.mxu0 0.0
        %2192 = vmatmul.mubr.f32.gmra.mxu0 %v1727
        %v2193 = vpop.f32.mrf.mxu0
        %v2194 = vadd.f32 %v1750, %v2193
        %v2195 = vpop.f32.mrf.mxu0
        %v2196 = vadd.f32 %v1750, %v2195
        %2197 = vmatprep.mubr.f32.mxu0 0.0
        %2198 = vmatmul.mubr.f32.gmra.mxu0 %v1728
        %v2199 = vpop.f32.mrf.mxu0
        %v2200 = vadd.f32 %v1755, %v2199
        %v2201 = vpop.f32.mrf.mxu0
        %v2202 = vadd.f32 %v1755, %v2201
        %2203 = vmatprep.mubr.f32.mxu0 0.0
        %2204 = vmatmul.mubr.f32.gmra.mxu0 %v1729
        %v2205 = vpop.f32.mrf.mxu0
        %v2206 = vadd.f32 %v1760, %v2205
        %v2207 = vpop.f32.mrf.mxu0
        %v2208 = vadd.f32 %v1760, %v2207
        %2209 = vmatprep.mubr.f32.mxu0 0.0
        %2210 = vmatmul.mubr.f32.gmra.mxu0 %v1730
        %v2211 = vpop.f32.mrf.mxu0
        %v2212 = vadd.f32 %v1765, %v2211
        %v2213 = vpop.f32.mrf.mxu0
        %v2214 = vadd.f32 %v1765, %v2213
        %2215 = vmatprep.mubr.f32.mxu0 0.0
        %2216 = vmatmul.mubr.f32.gmra.mxu0 %v1731
        %v2217 = vpop.f32.mrf.mxu0
        %v2218 = vadd.f32 %v1770, %v2217
        %v2219 = vpop.f32.mrf.mxu0
        %v2220 = vadd.f32 %v1770, %v2219
        %2221 = vmatprep.mubr.f32.mxu0 0.0
        %2222 = vmatmul.mubr.f32.gmra.mxu0 %v1732
        %v2223 = vpop.f32.mrf.mxu0
        %v2224 = vadd.f32 %v1775, %v2223
        %v2225 = vpop.f32.mrf.mxu0
        %v2226 = vadd.f32 %v1775, %v2225
        %2227 = vmatprep.mubr.f32.mxu0 0.0
        %2228 = vmatmul.mubr.f32.gmra.mxu0 %v1733
        %v2229 = vpop.f32.mrf.mxu0
        %v2230 = vadd.f32 %v1780, %v2229
        %v2231 = vpop.f32.mrf.mxu0
        %v2232 = vadd.f32 %v1780, %v2231
        %2233 = vdwg.mxu0
        %v2234 = vmax.f32 %v1849, 0.0
        %v2235 = vmax.f32 %v1851, 0.0
        %v2236 = vmax.f32 %v1962, 0.0
        %v2237 = vmax.f32 %v1964, 0.0
        %v2238 = vmax.f32 %v2075, 0.0
        %v2239 = vmax.f32 %v2077, 0.0
        %v2240 = vmax.f32 %v2188, 0.0
        %v2241 = vmax.f32 %v2190, 0.0
        %v2242 = vmax.f32 %v1855, 0.0
        %v2243 = vmax.f32 %v1857, 0.0
        %v2244 = vmax.f32 %v1968, 0.0
        %v2245 = vmax.f32 %v1970, 0.0
        %v2246 = vmax.f32 %v2081, 0.0
        %v2247 = vmax.f32 %v2083, 0.0
        %v2248 = vmax.f32 %v2194, 0.0
        %v2249 = vmax.f32 %v2196, 0.0
        %v2250 = vmax.f32 %v1861, 0.0
        %v2251 = vmax.f32 %v1863, 0.0
        %v2252 = vmax.f32 %v1974, 0.0
        %v2253 = vmax.f32 %v1976, 0.0
        %v2254 = vmax.f32 %v2087, 0.0
        %v2255 = vmax.f32 %v2089, 0.0
        %v2256 = vmax.f32 %v2200, 0.0
        %v2257 = vmax.f32 %v2202, 0.0
        %v2258 = vmax.f32 %v1867, 0.0
        %v2259 = vmax.f32 %v1869, 0.0
        %v2260 = vmax.f32 %v1980, 0.0
        %v2261 = vmax.f32 %v1982, 0.0
        %v2262 = vmax.f32 %v2093, 0.0
        %v2263 = vmax.f32 %v2095, 0.0
        %v2264 = vmax.f32 %v2206, 0.0
        %v2265 = vmax.f32 %v2208, 0.0
        %v2266 = vmax.f32 %v1873, 0.0
        %v2267 = vmax.f32 %v1875, 0.0
        %v2268 = vmax.f32 %v1986, 0.0
        %v2269 = vmax.f32 %v1988, 0.0
        %v2270 = vmax.f32 %v2099, 0.0
        %v2271 = vmax.f32 %v2101, 0.0
        %v2272 = vmax.f32 %v2212, 0.0
        %v2273 = vmax.f32 %v2214, 0.0
        %v2274 = vmax.f32 %v1879, 0.0
        %v2275 = vmax.f32 %v1881, 0.0
        %v2276 = vmax.f32 %v1992, 0.0
        %v2277 = vmax.f32 %v1994, 0.0
        %v2278 = vmax.f32 %v2105, 0.0
        %v2279 = vmax.f32 %v2107, 0.0
        %v2280 = vmax.f32 %v2218, 0.0
        %v2281 = vmax.f32 %v2220, 0.0
        %v2282 = vmax.f32 %v1885, 0.0
        %v2283 = vmax.f32 %v1887, 0.0
        %v2284 = vmax.f32 %v1998, 0.0
        %v2285 = vmax.f32 %v2000, 0.0
        %v2286 = vmax.f32 %v2111, 0.0
        %v2287 = vmax.f32 %v2113, 0.0
        %v2288 = vmax.f32 %v2224, 0.0
        %v2289 = vmax.f32 %v2226, 0.0
        %v2290 = vmax.f32 %v1891, 0.0
        %v2291 = vmax.f32 %v1893, 0.0
        %v2292 = vmax.f32 %v2004, 0.0
        %v2293 = vmax.f32 %v2006, 0.0
        %v2294 = vmax.f32 %v2117, 0.0
        %v2295 = vmax.f32 %v2119, 0.0
        %v2296 = vmax.f32 %v2230, 0.0
        %v2297 = vmax.f32 %v2232, 0.0
        %v2298 = vld [vmem:[%s5] sm:$0x1]
        %s2299 = sld [smem:[#allocation2]]
        %v2300 = vstv %s2299
        %vm2301 = vcmask 523264
        %v2303 = vsel %vm2301, %v2298, 0
        %2305 = vmatprep.subr.mxu0 0.0
        %2306 = vmatpush1.msra.mxu0 0.0
        %2307 = vmatprep.subr.mxu0 0.0
        %2308 = vmatpush1.msra.mxu0 0.0
        %2309 = vmatprep.subr.mxu0 0.0
        %2310 = vmatpush1.msra.mxu0 0.0
        %2311 = vmatprep.subr.mxu0 0.0
        %2312 = vmatpush1.msra.mxu0 0.0
        %2313 = vmatprep.subr.mxu0 0.0
        %2314 = vmatpush1.msra.mxu0 0.0
        %2315 = vmatprep.subr.mxu0 0.0
        %2316 = vmatpush1.msra.mxu0 0.0
        %2317 = vmatprep.subr.mxu0 0.0
        %2318 = vmatpush1.msra.mxu0 0.0
        %2319 = vmatprep.subr.mxu0 0.0
        %2320 = vmatpush1.msra.mxu0 0.0
        %2321 = vmatprep.subr.mxu0 %v2291
        %2322 = vmatpush1.msra.mxu0 %v2290
        %2323 = vmatprep.subr.mxu0 %v2283
        %2324 = vmatpush1.msra.mxu0 %v2282
        %2325 = vmatprep.subr.mxu0 %v2275
        %2326 = vmatpush1.msra.mxu0 %v2274
        %2327 = vmatprep.subr.mxu0 %v2267
        %2328 = vmatpush1.msra.mxu0 %v2266
        %2329 = vmatprep.subr.mxu0 %v2259
        %2330 = vmatpush1.msra.mxu0 %v2258
        %2331 = vmatprep.subr.mxu0 %v2251
        %2332 = vmatpush1.msra.mxu0 %v2250
        %2333 = vmatprep.subr.mxu0 %v2243
        %2334 = vmatpush1.msra.mxu0 %v2242
        %2335 = vmatprep.subr.mxu0 %v2235
        %2336 = vmatpush1.msra.mxu0 %v2234
        %2337 = vmatprep.subr.mxu0 0.0
        %2338 = vmatpush2.msra.mxu0 0.0
        %2339 = vmatprep.subr.mxu0 0.0
        %2340 = vmatpush2.msra.mxu0 0.0
        %2341 = vmatprep.subr.mxu0 0.0
        %2342 = vmatpush2.msra.mxu0 0.0
        %2343 = vmatprep.subr.mxu0 0.0
        %2344 = vmatpush2.msra.mxu0 0.0
        %2345 = vmatprep.subr.mxu0 0.0
        %2346 = vmatpush2.msra.mxu0 0.0
        %2347 = vmatprep.subr.mxu0 0.0
        %2348 = vmatpush2.msra.mxu0 0.0
        %2349 = vmatprep.subr.mxu0 0.0
        %2350 = vmatpush2.msra.mxu0 0.0
        %2351 = vmatprep.subr.mxu0 0.0
        %2352 = vmatpush2.msra.mxu0 0.0
        %2353 = vmatprep.subr.mxu0 0.0
        %2354 = vmatpush2.msra.mxu0 0.0
        %2355 = vmatprep.subr.mxu0 0.0
        %2356 = vmatpush2.msra.mxu0 0.0
        %2357 = vmatprep.subr.mxu0 0.0
        %2358 = vmatpush2.msra.mxu0 0.0
        %2359 = vmatprep.subr.mxu0 0.0
        %2360 = vmatpush2.msra.mxu0 0.0
        %2361 = vmatprep.subr.mxu0 0.0
        %2362 = vmatpush2.msra.mxu0 0.0
        %2363 = vmatprep.subr.mxu0 0.0
        %2364 = vmatpush2.msra.mxu0 0.0
        %2365 = vmatprep.subr.mxu0 0.0
        %2366 = vmatpush2.msra.mxu0 0.0
        %2367 = vmatprep.subr.mxu0 0.0
        %2368 = vmatpush2.msra.mxu0 0.0
        %2369 = vmatprep.mubr.f32.mxu0 0.0
        %2370 = vmatmul.mubr.f32.gmra.mxu0 %v2303
        %v2371 = vpop.f32.mrf.mxu0
        %v2372 = vadd.f32 %v2300, %v2371
        %v2373 = vpop.f32.mrf.mxu0
        %v2374 = vadd.f32 %v2300, %v2373
        %2375 = vdwg.mxu0
        %2376 = vmatprep.subr.mxu0 0.0
        %2377 = vmatpush1.msra.mxu0 0.0
        %2378 = vmatprep.subr.mxu0 0.0
        %2379 = vmatpush1.msra.mxu0 0.0
        %2380 = vmatprep.subr.mxu0 0.0
        %2381 = vmatpush1.msra.mxu0 0.0
        %2382 = vmatprep.subr.mxu0 0.0
        %2383 = vmatpush1.msra.mxu0 0.0
        %2384 = vmatprep.subr.mxu0 0.0
        %2385 = vmatpush1.msra.mxu0 0.0
        %2386 = vmatprep.subr.mxu0 0.0
        %2387 = vmatpush1.msra.mxu0 0.0
        %2388 = vmatprep.subr.mxu0 0.0
        %2389 = vmatpush1.msra.mxu0 0.0
        %2390 = vmatprep.subr.mxu0 0.0
        %2391 = vmatpush1.msra.mxu0 0.0
        %2392 = vmatprep.subr.mxu0 %v2293
        %2393 = vmatpush1.msra.mxu0 %v2292
        %2394 = vmatprep.subr.mxu0 %v2285
        %2395 = vmatpush1.msra.mxu0 %v2284
        %2396 = vmatprep.subr.mxu0 %v2277
        %2397 = vmatpush1.msra.mxu0 %v2276
        %2398 = vmatprep.subr.mxu0 %v2269
        %2399 = vmatpush1.msra.mxu0 %v2268
        %2400 = vmatprep.subr.mxu0 %v2261
        %2401 = vmatpush1.msra.mxu0 %v2260
        %2402 = vmatprep.subr.mxu0 %v2253
        %2403 = vmatpush1.msra.mxu0 %v2252
        %2404 = vmatprep.subr.mxu0 %v2245
        %2405 = vmatpush1.msra.mxu0 %v2244
        %2406 = vmatprep.subr.mxu0 %v2237
        %2407 = vmatpush1.msra.mxu0 %v2236
        %2408 = vmatprep.subr.mxu0 0.0
        %2409 = vmatpush2.msra.mxu0 0.0
        %2410 = vmatprep.subr.mxu0 0.0
        %2411 = vmatpush2.msra.mxu0 0.0
        %2412 = vmatprep.subr.mxu0 0.0
        %2413 = vmatpush2.msra.mxu0 0.0
        %2414 = vmatprep.subr.mxu0 0.0
        %2415 = vmatpush2.msra.mxu0 0.0
        %2416 = vmatprep.subr.mxu0 0.0
        %2417 = vmatpush2.msra.mxu0 0.0
        %2418 = vmatprep.subr.mxu0 0.0
        %2419 = vmatpush2.msra.mxu0 0.0
        %2420 = vmatprep.subr.mxu0 0.0
        %2421 = vmatpush2.msra.mxu0 0.0
        %2422 = vmatprep.subr.mxu0 0.0
        %2423 = vmatpush2.msra.mxu0 0.0
        %2424 = vmatprep.subr.mxu0 0.0
        %2425 = vmatpush2.msra.mxu0 0.0
        %2426 = vmatprep.subr.mxu0 0.0
        %2427 = vmatpush2.msra.mxu0 0.0
        %2428 = vmatprep.subr.mxu0 0.0
        %2429 = vmatpush2.msra.mxu0 0.0
        %2430 = vmatprep.subr.mxu0 0.0
        %2431 = vmatpush2.msra.mxu0 0.0
        %2432 = vmatprep.subr.mxu0 0.0
        %2433 = vmatpush2.msra.mxu0 0.0
        %2434 = vmatprep.subr.mxu0 0.0
        %2435 = vmatpush2.msra.mxu0 0.0
        %2436 = vmatprep.subr.mxu0 0.0
        %2437 = vmatpush2.msra.mxu0 0.0
        %2438 = vmatprep.subr.mxu0 0.0
        %2439 = vmatpush2.msra.mxu0 0.0
        %2440 = vmatprep.mubr.f32.mxu0 0.0
        %2441 = vmatmul.mubr.f32.gmra.mxu0 %v2303
        %v2442 = vpop.f32.mrf.mxu0
        %v2443 = vadd.f32 %v2300, %v2442
        %v2444 = vpop.f32.mrf.mxu0
        %v2445 = vadd.f32 %v2300, %v2444
        %2446 = vdwg.mxu0
        %2447 = vmatprep.subr.mxu0 0.0
        %2448 = vmatpush1.msra.mxu0 0.0
        %2449 = vmatprep.subr.mxu0 0.0
        %2450 = vmatpush1.msra.mxu0 0.0
        %2451 = vmatprep.subr.mxu0 0.0
        %2452 = vmatpush1.msra.mxu0 0.0
        %2453 = vmatprep.subr.mxu0 0.0
        %2454 = vmatpush1.msra.mxu0 0.0
        %2455 = vmatprep.subr.mxu0 0.0
        %2456 = vmatpush1.msra.mxu0 0.0
        %2457 = vmatprep.subr.mxu0 0.0
        %2458 = vmatpush1.msra.mxu0 0.0
        %2459 = vmatprep.subr.mxu0 0.0
        %2460 = vmatpush1.msra.mxu0 0.0
        %2461 = vmatprep.subr.mxu0 0.0
        %2462 = vmatpush1.msra.mxu0 0.0
        %2463 = vmatprep.subr.mxu0 %v2295
        %2464 = vmatpush1.msra.mxu0 %v2294
        %2465 = vmatprep.subr.mxu0 %v2287
        %2466 = vmatpush1.msra.mxu0 %v2286
        %2467 = vmatprep.subr.mxu0 %v2279
        %2468 = vmatpush1.msra.mxu0 %v2278
        %2469 = vmatprep.subr.mxu0 %v2271
        %2470 = vmatpush1.msra.mxu0 %v2270
        %2471 = vmatprep.subr.mxu0 %v2263
        %2472 = vmatpush1.msra.mxu0 %v2262
        %2473 = vmatprep.subr.mxu0 %v2255
        %2474 = vmatpush1.msra.mxu0 %v2254
        %2475 = vmatprep.subr.mxu0 %v2247
        %2476 = vmatpush1.msra.mxu0 %v2246
        %2477 = vmatprep.subr.mxu0 %v2239
        %2478 = vmatpush1.msra.mxu0 %v2238
        %2479 = vmatprep.subr.mxu0 0.0
        %2480 = vmatpush2.msra.mxu0 0.0
        %2481 = vmatprep.subr.mxu0 0.0
        %2482 = vmatpush2.msra.mxu0 0.0
        %2483 = vmatprep.subr.mxu0 0.0
        %2484 = vmatpush2.msra.mxu0 0.0
        %2485 = vmatprep.subr.mxu0 0.0
        %2486 = vmatpush2.msra.mxu0 0.0
        %2487 = vmatprep.subr.mxu0 0.0
        %2488 = vmatpush2.msra.mxu0 0.0
        %2489 = vmatprep.subr.mxu0 0.0
        %2490 = vmatpush2.msra.mxu0 0.0
        %2491 = vmatprep.subr.mxu0 0.0
        %2492 = vmatpush2.msra.mxu0 0.0
        %2493 = vmatprep.subr.mxu0 0.0
        %2494 = vmatpush2.msra.mxu0 0.0
        %2495 = vmatprep.subr.mxu0 0.0
        %2496 = vmatpush2.msra.mxu0 0.0
        %2497 = vmatprep.subr.mxu0 0.0
        %2498 = vmatpush2.msra.mxu0 0.0
        %2499 = vmatprep.subr.mxu0 0.0
        %2500 = vmatpush2.msra.mxu0 0.0
        %2501 = vmatprep.subr.mxu0 0.0
        %2502 = vmatpush2.msra.mxu0 0.0
        %2503 = vmatprep.subr.mxu0 0.0
        %2504 = vmatpush2.msra.mxu0 0.0
        %2505 = vmatprep.subr.mxu0 0.0
        %2506 = vmatpush2.msra.mxu0 0.0
        %2507 = vmatprep.subr.mxu0 0.0
        %2508 = vmatpush2.msra.mxu0 0.0
        %2509 = vmatprep.subr.mxu0 0.0
        %2510 = vmatpush2.msra.mxu0 0.0
        %2511 = vmatprep.mubr.f32.mxu0 0.0
        %2512 = vmatmul.mubr.f32.gmra.mxu0 %v2303
        %v2513 = vpop.f32.mrf.mxu0
        %v2514 = vadd.f32 %v2300, %v2513
        %v2515 = vpop.f32.mrf.mxu0
        %v2516 = vadd.f32 %v2300, %v2515
        %2517 = vdwg.mxu0
        %2518 = vmatprep.subr.mxu0 0.0
        %2519 = vmatpush1.msra.mxu0 0.0
        %2520 = vmatprep.subr.mxu0 0.0
        %2521 = vmatpush1.msra.mxu0 0.0
        %2522 = vmatprep.subr.mxu0 0.0
        %2523 = vmatpush1.msra.mxu0 0.0
        %2524 = vmatprep.subr.mxu0 0.0
        %2525 = vmatpush1.msra.mxu0 0.0
        %2526 = vmatprep.subr.mxu0 0.0
        %2527 = vmatpush1.msra.mxu0 0.0
        %2528 = vmatprep.subr.mxu0 0.0
        %2529 = vmatpush1.msra.mxu0 0.0
        %2530 = vmatprep.subr.mxu0 0.0
        %2531 = vmatpush1.msra.mxu0 0.0
        %2532 = vmatprep.subr.mxu0 0.0
        %2533 = vmatpush1.msra.mxu0 0.0
        %2534 = vmatprep.subr.mxu0 %v2297
        %2535 = vmatpush1.msra.mxu0 %v2296
        %2536 = vmatprep.subr.mxu0 %v2289
        %2537 = vmatpush1.msra.mxu0 %v2288
        %2538 = vmatprep.subr.mxu0 %v2281
        %2539 = vmatpush1.msra.mxu0 %v2280
        %2540 = vmatprep.subr.mxu0 %v2273
        %2541 = vmatpush1.msra.mxu0 %v2272
        %2542 = vmatprep.subr.mxu0 %v2265
        %2543 = vmatpush1.msra.mxu0 %v2264
        %2544 = vmatprep.subr.mxu0 %v2257
        %2545 = vmatpush1.msra.mxu0 %v2256
        %2546 = vmatprep.subr.mxu0 %v2249
        %2547 = vmatpush1.msra.mxu0 %v2248
        %2548 = vmatprep.subr.mxu0 %v2241
        %2549 = vmatpush1.msra.mxu0 %v2240
        %2550 = vmatprep.subr.mxu0 0.0
        %2551 = vmatpush2.msra.mxu0 0.0
        %2552 = vmatprep.subr.mxu0 0.0
        %2553 = vmatpush2.msra.mxu0 0.0
        %2554 = vmatprep.subr.mxu0 0.0
        %2555 = vmatpush2.msra.mxu0 0.0
        %2556 = vmatprep.subr.mxu0 0.0
        %2557 = vmatpush2.msra.mxu0 0.0
        %2558 = vmatprep.subr.mxu0 0.0
        %2559 = vmatpush2.msra.mxu0 0.0
        %2560 = vmatprep.subr.mxu0 0.0
        %2561 = vmatpush2.msra.mxu0 0.0
        %2562 = vmatprep.subr.mxu0 0.0
        %2563 = vmatpush2.msra.mxu0 0.0
        %2564 = vmatprep.subr.mxu0 0.0
        %2565 = vmatpush2.msra.mxu0 0.0
        %2566 = vmatprep.subr.mxu0 0.0
        %2567 = vmatpush2.msra.mxu0 0.0
        %2568 = vmatprep.subr.mxu0 0.0
        %2569 = vmatpush2.msra.mxu0 0.0
        %2570 = vmatprep.subr.mxu0 0.0
        %2571 = vmatpush2.msra.mxu0 0.0
        %2572 = vmatprep.subr.mxu0 0.0
        %2573 = vmatpush2.msra.mxu0 0.0
        %2574 = vmatprep.subr.mxu0 0.0
        %2575 = vmatpush2.msra.mxu0 0.0
        %2576 = vmatprep.subr.mxu0 0.0
        %2577 = vmatpush2.msra.mxu0 0.0
        %2578 = vmatprep.subr.mxu0 0.0
        %2579 = vmatpush2.msra.mxu0 0.0
        %2580 = vmatprep.subr.mxu0 0.0
        %2581 = vmatpush2.msra.mxu0 0.0
        %2582 = vmatprep.mubr.f32.mxu0 0.0
        %2583 = vmatmul.mubr.f32.gmra.mxu0 %v2303
        %v2584 = vpop.f32.mrf.mxu0
        %v2585 = vadd.f32 %v2300, %v2584
        %v2586 = vpop.f32.mrf.mxu0
        %v2587 = vadd.f32 %v2300, %v2586
        %2588 = vdwg.mxu0
        %v2597 = vcombine.low %v2372, %v2374
        %v2598 = vcombine.low %v2443, %v2445
        %v2599 = vcombine.low %v2514, %v2516
        %v2600 = vcombine.low %v2585, %v2587
        %v2602 = vunpack.c.l.s4 1966171168
        %v2603 = vunpack.c.0.s8 %v2602
        %v2604 = vlaneseq
        %v2605 = vshrl.u32 %v2604, 7
        %v2606 = vsub.s32 %v2603, %v2605
        %v2607 = vrot.slane %v2597, %v2606
        %v2609 = vunpack.c.l.s4 1966171168
        %v2610 = vunpack.c.0.s8 %v2609
        %v2611 = vlaneseq
        %v2612 = vshrl.u32 %v2611, 7
        %v2613 = vsub.s32 %v2610, %v2612
        %v2614 = vrot.slane %v2598, %v2613
        %v2616 = vunpack.c.l.s4 1966171168
        %v2617 = vunpack.c.0.s8 %v2616
        %v2618 = vlaneseq
        %v2619 = vshrl.u32 %v2618, 7
        %v2620 = vsub.s32 %v2617, %v2619
        %v2621 = vrot.slane %v2599, %v2620
        %v2623 = vunpack.c.l.s4 1966171168
        %v2624 = vunpack.c.0.s8 %v2623
        %v2625 = vlaneseq
        %v2626 = vshrl.u32 %v2625, 7
        %v2627 = vsub.s32 %v2624, %v2626
        %v2628 = vrot.slane %v2600, %v2627
        %v2629 = vcombine.low %v2607, %v2614
        %v2630 = vcombine.low %v2621, %v2628
        %v2632 = vunpack.c.l.s4 1966171168
        %v2633 = vunpack.c.0.s8 %v2632
        %v2634 = vlaneseq
        %v2635 = vshrl.u32 %v2634, 7
        %v2636 = vsub.s32 %v2633, %v2635
        %v2637 = vrot.slane %v2629, %v2636
        %v2639 = vunpack.c.l.s4 1966171168
        %v2640 = vunpack.c.0.s8 %v2639
        %v2641 = vlaneseq
        %v2642 = vshrl.u32 %v2641, 7
        %v2643 = vsub.s32 %v2640, %v2642
        %v2644 = vrot.slane %v2630, %v2643
        %v2645 = vcombine.low %v2637, %v2644
        %2647 = vst [vmem:[%s273] sm:$0xff] %v2645
        %s2648 = sand.u32 %s182, 1
        %s2649 = scalar_lea.sflag [#allocation4], %s2648
        %s2650 = sand.u32 %s182, 1
        %s2651 = smul.addr %s2650, 8
        %s2652 = scalar_lea.vmem [#allocation3], %s2651
        // Predicated region
        $region49: #{tpu_custom_call.1} parent=47 // pred_check
          %p2653 = pneg %p192
        $region50: #{tpu_custom_call.1} parent=47 // pred_check_branch
          %2655 = sbr.rel (%p2653) target = $region52
        $region51: #{tpu_custom_call.1} parent=47 // pred_region
          %s2656 = smul.u32 8, %s22
          %s2658 = ssub.s32 128, 128
          %2659 = vsyncadd %s2649, %s2658
          %s2660 = smul.addr %s2656, 16
          %s2661 = scalar_lea.hbm %s7, %s2660
          %s2663 = sshll.u32 %s2652, 4
          %s2664 = int_to_ptr.vmem [resolvable:$true] %s2663
          %2666 = dma.vmem_to_hbm [thread:$0]  %s2664, 128, %s2661, %s2649
        $region52: #{tpu_custom_call.1} parent=47 // pred_fallthru
          _
      $region48: #{tpu_custom_call.1} parent=5 // pred_fallthru
        _
      %p2667 = scmp.le.s32.totalorder 2, %s17
      // Predicated region
      $region53: #{tpu_custom_call.1} parent=5 // pred_check
        %p2668 = pneg %p2667
      $region54: #{tpu_custom_call.1} parent=5 // pred_check_branch
        %2670 = sbr.rel (%p2668) target = $region56
      $region55: #{tpu_custom_call.1} parent=5 // pred_region
        %s2671 = ssub.s32 %s17, 2
        // Predicated region
        $region57: #{tpu_custom_call.1} parent=55 // pred_check
          %p2672 = pneg %p198
        $region58: #{tpu_custom_call.1} parent=55 // pred_check_branch
          %2674 = sbr.rel (%p2672) target = $region60
        $region59: #{tpu_custom_call.1} parent=55 // pred_region
          %s2675 = sand.u32 %s183, 1
          %s2676 = scalar_lea.sflag [#allocation4], %s2675
          %s2677 = sand.u32 %s183, 1
          %s2678 = smul.addr %s2677, 8
          %s2679 = scalar_lea.vmem [#allocation3], %s2678
          %2680 = dma.done %s2676, 128
        $region60: #{tpu_custom_call.1} parent=55 // pred_fallthru
          _
      $region56: #{tpu_custom_call.1} parent=5 // pred_fallthru
        _
    $region6: #{tpu_custom_call.1} parent=1 // loop_footer
      %s21 = sadd.s32 1, %s17
    $region7: #{tpu_custom_call.1} parent=1 // loop_footer_branch
      %16 = sbr.rel target = $region3
    $region8: #{tpu_custom_call.1} parent=1 // loop_exit
      _
    %2681 = vsyncpa [#allocation4], 1
    %s2682 = scalar_lea.sflag [#allocation4], 1
    %2683 = vsyncpa %s2682, 1

</llo_original>
